<compile_context>
chip_gen: v6e
topology: v6e:2x2x1
jax: 0.10.0
libtpu: 0.0.40
codegen_flags: <defaults>
</compile_context>

<pallas_src>
import math

import jax
import jax.numpy as jnp
from jax.experimental import pallas as pl
from jax.experimental.pallas import tpu as pltpu


# --------------------------------------------------------------------------- #
# Kernel
# --------------------------------------------------------------------------- #
def vae_forward_kernel(x_ref, eps_ref,
                       w1, b1, w2, b2,
                       w3m, b3m, w3lv, b3lv,
                       w4, b4, w5, b5, w6, b6,
                       recon_ref, mean_ref, logvar_ref):
    def dot_bf16(a, w_ref):
        # bf16 operands -> MXU-native path; accumulate in f32.
        return jnp.dot(a.astype(jnp.bfloat16), w_ref[...],
                       preferred_element_type=jnp.float32)

    x = x_ref[...]

    # ---- encoder: Linear -> ReLU -> Linear -> ReLU -> (split) Linear ----
    h = jnp.maximum(dot_bf16(x, w1) + b1[...], 0.0)
    h = jnp.maximum(dot_bf16(h, w2) + b2[...], 0.0)

    # Third encoder layer split into mean / log_var halves: same math as the
    # [256, 2*latent] layer + chunk, but without any lane-offset slicing.
    mean = dot_bf16(h, w3m) + b3m[...]
    log_var = jnp.clip(dot_bf16(h, w3lv) + b3lv[...], -10.0, 10.0)

    # ---- reparameterize ----
    std = jnp.exp(0.5 * log_var) + 1e-6
    z = mean + eps_ref[...] * std

    # ---- decoder: Linear -> ReLU -> Linear -> ReLU -> Linear ----
    d = jnp.maximum(dot_bf16(z, w4) + b4[...], 0.0)
    d = jnp.maximum(dot_bf16(d, w5) + b5[...], 0.0)
    recon = dot_bf16(d, w6) + b6[...]

    recon_ref[...] = recon
    mean_ref[...] = mean
    logvar_ref[...] = log_var


# --------------------------------------------------------------------------- #
# Wrapper
# --------------------------------------------------------------------------- #
_PARAM_ORDER = ("w1", "b1", "w2", "b2", "w3m", "b3m", "w3lv", "b3lv",
                "w4", "b4", "w5", "b5", "w6", "b6")


def vae_forward(x, eps, params, latent_dim, *, tile_b=None):
    """Fused VAE forward.  Tiles the batch dimension; weights stay VMEM-resident."""
    batch, input_dim = x.shape
    assert eps.shape == (batch, latent_dim)

    # Pick a batch tile: <=128 rows keeps 512-wide f32 intermediates well clear
    # of vreg spills and comfortably inside v7x's 64 MiB VMEM.
    if tile_b is None:
        tile_b = 128 if batch >= 128 else max(8, -(-batch // 8) * 8)
    padded = -(-batch // tile_b) * tile_b
    if padded != batch:
        x = jnp.pad(x, ((0, padded - batch), (0, 0)))
        eps = jnp.pad(eps, ((0, padded - batch), (0, 0)))
    grid = (padded // tile_b,)

    weights = [params[name] for name in _PARAM_ORDER]

    def batch_spec(feat):
        return pl.BlockSpec((tile_b, feat), lambda i: (i, 0))

    def resident_spec(a):
        # Full-array block, constant block index -> fetched once, stays resident.
        return pl.BlockSpec(a.shape, lambda i: (0, 0))

    in_specs = ([batch_spec(input_dim), batch_spec(latent_dim)]
                + [resident_spec(a) for a in weights])

    out_shapes = (
        jax.ShapeDtypeStruct((padded, input_dim), jnp.float32),   # reconstruction
        jax.ShapeDtypeStruct((padded, latent_dim), jnp.float32),  # mean
        jax.ShapeDtypeStruct((padded, latent_dim), jnp.float32),  # log_var
    )
    out_specs = (batch_spec(input_dim), batch_spec(latent_dim),
                 batch_spec(latent_dim))

    # Advisory cost estimate for the XLA scheduler.
    flops = 2 * padded * (input_dim * 512 + 512 * 256 + 256 * 2 * latent_dim
                          + latent_dim * 256 + 256 * 512 + 512 * input_dim)
    weight_bytes = sum(a.size * a.dtype.itemsize for a in weights)
    io_bytes = ((x.size + eps.size) * 4
                + sum(math.prod(s.shape) * 4 for s in out_shapes))
    cost = pl.CostEstimate(flops=flops,
                           transcendentals=padded * latent_dim,
                           bytes_accessed=weight_bytes + io_bytes)

    recon, mean, log_var = pl.pallas_call(
        vae_forward_kernel,
        out_shape=out_shapes,
        grid=grid,
        in_specs=in_specs,
        out_specs=out_specs,
        compiler_params=pltpu.CompilerParams(
            dimension_semantics=("parallel",)),
        cost_estimate=cost,
    )(x, eps, *weights)

    return recon[:batch], mean[:batch], log_var[:batch]


# --------------------------------------------------------------------------- #
# Parameter init (PyTorch nn.Linear style) + pure-JAX reference
# --------------------------------------------------------------------------- #
def init_params(key, input_dim, latent_dim):
    """U(-1/sqrt(fan_in), +1/sqrt(fan_in)); weights stored [in, out] in bf16,
    biases [1, out] in f32.  Encoder layer 3 is split into mean/logvar halves."""
    layer_dims = [
        (input_dim, 512), (512, 256), (256, latent_dim * 2),   # encoder
        (latent_dim, 256), (256, 512), (512, input_dim),       # decoder
    ]
    raw = []
    for i, (din, dout) in enumerate(layer_dims):
        kw, kb = jax.random.split(jax.random.fold_in(key, i))
        scale = 1.0 / float(din) ** 0.5
        w = jax.random.uniform(kw, (din, dout), jnp.float32, -scale, scale)
        b = jax.random.uniform(kb, (1, dout), jnp.float32, -scale, scale)
        raw.append((w, b))
    (w1, b1), (w2, b2), (w3, b3), (w4, b4), (w5, b5), (w6, b6) = raw
    bf16 = jnp.bfloat16
    return dict(
        w1=w1.astype(bf16), b1=b1,
        w2=w2.astype(bf16), b2=b2,
        w3m=w3[:, :latent_dim].astype(bf16), b3m=b3[:, :latent_dim],
        w3lv=w3[:, latent_dim:].astype(bf16), b3lv=b3[:, latent_dim:],
        w4=w4.astype(bf16), b4=b4,
        w5=w5.astype(bf16), b5=b5,
        w6=w6.astype(bf16), b6=b6,
    )


def vae_forward_ref(x, eps, params):
    """Pure-JAX reference using the same bf16-operand / f32-accumulate matmuls."""
    def dot_bf16(a, w):
        return jnp.dot(a.astype(jnp.bfloat16), w,
                       preferred_element_type=jnp.float32)
    p = params
    h = jnp.maximum(dot_bf16(x, p["w1"]) + p["b1"], 0.0)
    h = jnp.maximum(dot_bf16(h, p["w2"]) + p["b2"], 0.0)
    mean = dot_bf16(h, p["w3m"]) + p["b3m"]
    log_var = jnp.clip(dot_bf16(h, p["w3lv"]) + p["b3lv"], -10.0, 10.0)
    std = jnp.exp(0.5 * log_var) + 1e-6
    z = mean + eps * std
    d = jnp.maximum(dot_bf16(z, p["w4"]) + p["b4"], 0.0)
    d = jnp.maximum(dot_bf16(d, p["w5"]) + p["b5"], 0.0)
    recon = dot_bf16(d, p["w6"]) + p["b6"]
    return recon, mean, log_var


# --------------------------------------------------------------------------- #
# Demo / correctness check
# --------------------------------------------------------------------------- #
if __name__ == "__main__":
    batch = 64
    input_dim = 64
    latent_dim = 16

    key = jax.random.PRNGKey(0)
    k_x, k_eps, k_p = jax.random.split(key, 3)

    x = jax.random.normal(k_x, (batch, input_dim), jnp.float32)
    # eps plays the role of torch.randn_like(std) in reparameterize()
    eps = jax.random.normal(k_eps, (batch, latent_dim), jnp.float32)
    params = init_params(k_p, input_dim, latent_dim)

    # tile_b=32 -> grid=(2,): exercises batch tiling + resident weights.
    recon, mean, log_var = vae_forward(x, eps, params, latent_dim, tile_b=32)
    jax.block_until_ready((recon, mean, log_var))

    r_ref, m_ref, lv_ref = vae_forward_ref(x, eps, params)
    assert recon.shape == (batch, input_dim)
    assert mean.shape == (batch, latent_dim)
    assert log_var.shape == (batch, latent_dim)
    # bf16 matmul operands -> slightly looser tolerances than pure f32.
    assert jnp.allclose(recon, r_ref, atol=2e-2, rtol=2e-2)
    assert jnp.allclose(mean, m_ref, atol=2e-2, rtol=2e-2)
    assert jnp.allclose(log_var, lv_ref, atol=2e-2, rtol=2e-2)

    print("KERNEL_OK")
</pallas_src>

<mosaic_0001>
module attributes {stable_mosaic.version = 11 : i64} {
  func.func @vae_forward_kernel(%arg0: i32, %arg1: memref<32x64xf32, #tpu.memory_space<vmem>>, %arg2: memref<32x16xf32, #tpu.memory_space<vmem>>, %arg3: memref<64x512xbf16, #tpu.memory_space<vmem>>, %arg4: memref<1x512xf32, #tpu.memory_space<vmem>>, %arg5: memref<512x256xbf16, #tpu.memory_space<vmem>>, %arg6: memref<1x256xf32, #tpu.memory_space<vmem>>, %arg7: memref<256x16xbf16, #tpu.memory_space<vmem>>, %arg8: memref<1x16xf32, #tpu.memory_space<vmem>>, %arg9: memref<256x16xbf16, #tpu.memory_space<vmem>>, %arg10: memref<1x16xf32, #tpu.memory_space<vmem>>, %arg11: memref<16x256xbf16, #tpu.memory_space<vmem>>, %arg12: memref<1x256xf32, #tpu.memory_space<vmem>>, %arg13: memref<256x512xbf16, #tpu.memory_space<vmem>>, %arg14: memref<1x512xf32, #tpu.memory_space<vmem>>, %arg15: memref<512x64xbf16, #tpu.memory_space<vmem>>, %arg16: memref<1x64xf32, #tpu.memory_space<vmem>>, %arg17: memref<32x64xf32, #tpu.memory_space<vmem>>, %arg18: memref<32x16xf32, #tpu.memory_space<vmem>>, %arg19: memref<32x16xf32, #tpu.memory_space<vmem>>) attributes {dimension_semantics = [#tpu.dimension_semantics<parallel>], iteration_bounds = array<i64: 2>, scalar_prefetch = 0 : i64, scratch_operands = 0 : i64, tpu.core_type = #tpu.core_type<tc>, window_params = [{transform_indices = @transform_0, window_bounds = array<i64: 32, 64>}, {transform_indices = @transform_1, window_bounds = array<i64: 32, 16>}, {pipeline_mode = #tpu.pipeline_mode<synchronous>, transform_indices = @transform_2, window_bounds = array<i64: 64, 512>}, {pipeline_mode = #tpu.pipeline_mode<synchronous>, transform_indices = @transform_3, window_bounds = array<i64: 1, 512>}, {pipeline_mode = #tpu.pipeline_mode<synchronous>, transform_indices = @transform_4, window_bounds = array<i64: 512, 256>}, {pipeline_mode = #tpu.pipeline_mode<synchronous>, transform_indices = @transform_5, window_bounds = array<i64: 1, 256>}, {pipeline_mode = #tpu.pipeline_mode<synchronous>, transform_indices = @transform_6, window_bounds = array<i64: 256, 16>}, {pipeline_mode = #tpu.pipeline_mode<synchronous>, transform_indices = @transform_7, window_bounds = array<i64: 1, 16>}, {pipeline_mode = #tpu.pipeline_mode<synchronous>, transform_indices = @transform_8, window_bounds = array<i64: 256, 16>}, {pipeline_mode = #tpu.pipeline_mode<synchronous>, transform_indices = @transform_9, window_bounds = array<i64: 1, 16>}, {pipeline_mode = #tpu.pipeline_mode<synchronous>, transform_indices = @transform_10, window_bounds = array<i64: 16, 256>}, {pipeline_mode = #tpu.pipeline_mode<synchronous>, transform_indices = @transform_11, window_bounds = array<i64: 1, 256>}, {pipeline_mode = #tpu.pipeline_mode<synchronous>, transform_indices = @transform_12, window_bounds = array<i64: 256, 512>}, {pipeline_mode = #tpu.pipeline_mode<synchronous>, transform_indices = @transform_13, window_bounds = array<i64: 1, 512>}, {pipeline_mode = #tpu.pipeline_mode<synchronous>, transform_indices = @transform_14, window_bounds = array<i64: 512, 64>}, {pipeline_mode = #tpu.pipeline_mode<synchronous>, transform_indices = @transform_15, window_bounds = array<i64: 1, 64>}, {transform_indices = @transform_16, window_bounds = array<i64: 32, 64>}, {transform_indices = @transform_17, window_bounds = array<i64: 32, 16>}, {transform_indices = @transform_18, window_bounds = array<i64: 32, 16>}]} {
    %c0 = arith.constant 0 : index
    %c0_0 = arith.constant 0 : index
    %0 = vector.load %arg1[%c0, %c0_0] : memref<32x64xf32, #tpu.memory_space<vmem>>, vector<32x64xf32>
    %1 = arith.truncf %0 : vector<32x64xf32> to vector<32x64xbf16>
    %c0_1 = arith.constant 0 : index
    %c0_2 = arith.constant 0 : index
    %2 = vector.load %arg3[%c0_1, %c0_2] : memref<64x512xbf16, #tpu.memory_space<vmem>>, vector<64x512xbf16>
    %cst = arith.constant dense<0.000000e+00> : vector<32x512xf32>
    %3 = tpu.matmul %1, %2, %cst {dimension_numbers = #tpu.dot_dimension_numbers<[1], [0], [0], [1], [0, 0, 1, 1], [], []>} : vector<32x64xbf16>, vector<64x512xbf16>, vector<32x512xf32> -> vector<32x512xf32>
    %c0_3 = arith.constant 0 : index
    %c0_4 = arith.constant 0 : index
    %4 = vector.load %arg4[%c0_3, %c0_4] : memref<1x512xf32, #tpu.memory_space<vmem>>, vector<1x512xf32>
    %5 = vector.broadcast %4 : vector<1x512xf32> to vector<32x512xf32>
    %6 = arith.addf %3, %5 : vector<32x512xf32>
    %cst_5 = arith.constant 0.000000e+00 : f32
    %7 = vector.broadcast %cst_5 : f32 to vector<32x512xf32>
    %8 = arith.maximumf %6, %7 : vector<32x512xf32>
    %9 = arith.truncf %8 : vector<32x512xf32> to vector<32x512xbf16>
    %c0_6 = arith.constant 0 : index
    %c0_7 = arith.constant 0 : index
    %10 = vector.load %arg5[%c0_6, %c0_7] : memref<512x256xbf16, #tpu.memory_space<vmem>>, vector<512x256xbf16>
    %cst_8 = arith.constant dense<0.000000e+00> : vector<32x256xf32>
    %11 = tpu.matmul %9, %10, %cst_8 {dimension_numbers = #tpu.dot_dimension_numbers<[1], [0], [0], [1], [0, 0, 1, 1], [], []>} : vector<32x512xbf16>, vector<512x256xbf16>, vector<32x256xf32> -> vector<32x256xf32>
    %c0_9 = arith.constant 0 : index
    %c0_10 = arith.constant 0 : index
    %12 = vector.load %arg6[%c0_9, %c0_10] : memref<1x256xf32, #tpu.memory_space<vmem>>, vector<1x256xf32>
    %13 = vector.broadcast %12 : vector<1x256xf32> to vector<32x256xf32>
    %14 = arith.addf %11, %13 : vector<32x256xf32>
    %cst_11 = arith.constant 0.000000e+00 : f32
    %15 = vector.broadcast %cst_11 : f32 to vector<32x256xf32>
    %16 = arith.maximumf %14, %15 : vector<32x256xf32>
    %17 = arith.truncf %16 : vector<32x256xf32> to vector<32x256xbf16>
    %c0_12 = arith.constant 0 : index
    %c0_13 = arith.constant 0 : index
    %18 = vector.load %arg7[%c0_12, %c0_13] : memref<256x16xbf16, #tpu.memory_space<vmem>>, vector<256x16xbf16>
    %cst_14 = arith.constant dense<0.000000e+00> : vector<32x16xf32>
    %19 = tpu.matmul %17, %18, %cst_14 {dimension_numbers = #tpu.dot_dimension_numbers<[1], [0], [0], [1], [0, 0, 1, 1], [], []>} : vector<32x256xbf16>, vector<256x16xbf16>, vector<32x16xf32> -> vector<32x16xf32>
    %c0_15 = arith.constant 0 : index
    %c0_16 = arith.constant 0 : index
    %20 = vector.load %arg8[%c0_15, %c0_16] : memref<1x16xf32, #tpu.memory_space<vmem>>, vector<1x16xf32>
    %21 = vector.broadcast %20 : vector<1x16xf32> to vector<32x16xf32>
    %22 = arith.addf %19, %21 : vector<32x16xf32>
    %23 = arith.truncf %16 : vector<32x256xf32> to vector<32x256xbf16>
    %c0_17 = arith.constant 0 : index
    %c0_18 = arith.constant 0 : index
    %24 = vector.load %arg9[%c0_17, %c0_18] : memref<256x16xbf16, #tpu.memory_space<vmem>>, vector<256x16xbf16>
    %cst_19 = arith.constant dense<0.000000e+00> : vector<32x16xf32>
    %25 = tpu.matmul %23, %24, %cst_19 {dimension_numbers = #tpu.dot_dimension_numbers<[1], [0], [0], [1], [0, 0, 1, 1], [], []>} : vector<32x256xbf16>, vector<256x16xbf16>, vector<32x16xf32> -> vector<32x16xf32>
    %c0_20 = arith.constant 0 : index
    %c0_21 = arith.constant 0 : index
    %26 = vector.load %arg10[%c0_20, %c0_21] : memref<1x16xf32, #tpu.memory_space<vmem>>, vector<1x16xf32>
    %27 = vector.broadcast %26 : vector<1x16xf32> to vector<32x16xf32>
    %28 = arith.addf %25, %27 : vector<32x16xf32>
    %cst_22 = arith.constant -1.000000e+01 : f32
    %cst_23 = arith.constant 1.000000e+01 : f32
    %29 = vector.broadcast %cst_22 : f32 to vector<32x16xf32>
    %30 = arith.maximumf %29, %28 : vector<32x16xf32>
    %31 = vector.broadcast %cst_23 : f32 to vector<32x16xf32>
    %32 = arith.minimumf %31, %30 : vector<32x16xf32>
    %cst_24 = arith.constant 5.000000e-01 : f32
    %33 = vector.broadcast %cst_24 : f32 to vector<32x16xf32>
    %34 = arith.mulf %33, %32 : vector<32x16xf32>
    %35 = math.exp %34 : vector<32x16xf32>
    %cst_25 = arith.constant 9.99999997E-7 : f32
    %36 = vector.broadcast %cst_25 : f32 to vector<32x16xf32>
    %37 = arith.addf %35, %36 : vector<32x16xf32>
    %c0_26 = arith.constant 0 : index
    %c0_27 = arith.constant 0 : index
    %38 = vector.load %arg2[%c0_26, %c0_27] : memref<32x16xf32, #tpu.memory_space<vmem>>, vector<32x16xf32>
    %39 = arith.mulf %38, %37 : vector<32x16xf32>
    %40 = arith.addf %22, %39 : vector<32x16xf32>
    %41 = arith.truncf %40 : vector<32x16xf32> to vector<32x16xbf16>
    %c0_28 = arith.constant 0 : index
    %c0_29 = arith.constant 0 : index
    %42 = vector.load %arg11[%c0_28, %c0_29] : memref<16x256xbf16, #tpu.memory_space<vmem>>, vector<16x256xbf16>
    %cst_30 = arith.constant dense<0.000000e+00> : vector<32x256xf32>
    %43 = tpu.matmul %41, %42, %cst_30 {dimension_numbers = #tpu.dot_dimension_numbers<[1], [0], [0], [1], [0, 0, 1, 1], [], []>} : vector<32x16xbf16>, vector<16x256xbf16>, vector<32x256xf32> -> vector<32x256xf32>
    %c0_31 = arith.constant 0 : index
    %c0_32 = arith.constant 0 : index
    %44 = vector.load %arg12[%c0_31, %c0_32] : memref<1x256xf32, #tpu.memory_space<vmem>>, vector<1x256xf32>
    %45 = vector.broadcast %44 : vector<1x256xf32> to vector<32x256xf32>
    %46 = arith.addf %43, %45 : vector<32x256xf32>
    %cst_33 = arith.constant 0.000000e+00 : f32
    %47 = vector.broadcast %cst_33 : f32 to vector<32x256xf32>
    %48 = arith.maximumf %46, %47 : vector<32x256xf32>
    %49 = arith.truncf %48 : vector<32x256xf32> to vector<32x256xbf16>
    %c0_34 = arith.constant 0 : index
    %c0_35 = arith.constant 0 : index
    %50 = vector.load %arg13[%c0_34, %c0_35] : memref<256x512xbf16, #tpu.memory_space<vmem>>, vector<256x512xbf16>
    %cst_36 = arith.constant dense<0.000000e+00> : vector<32x512xf32>
    %51 = tpu.matmul %49, %50, %cst_36 {dimension_numbers = #tpu.dot_dimension_numbers<[1], [0], [0], [1], [0, 0, 1, 1], [], []>} : vector<32x256xbf16>, vector<256x512xbf16>, vector<32x512xf32> -> vector<32x512xf32>
    %c0_37 = arith.constant 0 : index
    %c0_38 = arith.constant 0 : index
    %52 = vector.load %arg14[%c0_37, %c0_38] : memref<1x512xf32, #tpu.memory_space<vmem>>, vector<1x512xf32>
    %53 = vector.broadcast %52 : vector<1x512xf32> to vector<32x512xf32>
    %54 = arith.addf %51, %53 : vector<32x512xf32>
    %cst_39 = arith.constant 0.000000e+00 : f32
    %55 = vector.broadcast %cst_39 : f32 to vector<32x512xf32>
    %56 = arith.maximumf %54, %55 : vector<32x512xf32>
    %57 = arith.truncf %56 : vector<32x512xf32> to vector<32x512xbf16>
    %c0_40 = arith.constant 0 : index
    %c0_41 = arith.constant 0 : index
    %58 = vector.load %arg15[%c0_40, %c0_41] : memref<512x64xbf16, #tpu.memory_space<vmem>>, vector<512x64xbf16>
    %cst_42 = arith.constant dense<0.000000e+00> : vector<32x64xf32>
    %59 = tpu.matmul %57, %58, %cst_42 {dimension_numbers = #tpu.dot_dimension_numbers<[1], [0], [0], [1], [0, 0, 1, 1], [], []>} : vector<32x512xbf16>, vector<512x64xbf16>, vector<32x64xf32> -> vector<32x64xf32>
    %c0_43 = arith.constant 0 : index
    %c0_44 = arith.constant 0 : index
    %60 = vector.load %arg16[%c0_43, %c0_44] : memref<1x64xf32, #tpu.memory_space<vmem>>, vector<1x64xf32>
    %61 = vector.broadcast %60 : vector<1x64xf32> to vector<32x64xf32>
    %62 = arith.addf %59, %61 : vector<32x64xf32>
    %c0_45 = arith.constant 0 : index
    %c0_46 = arith.constant 0 : index
    %63 = vector.load %arg17[%c0_45, %c0_46] : memref<32x64xf32, #tpu.memory_space<vmem>>, vector<32x64xf32>
    tpu.vector_store %arg17[%c0_45, %c0_46], %62 {strides = array<i32>} : memref<32x64xf32, #tpu.memory_space<vmem>>, vector<32x64xf32>,
    %c0_47 = arith.constant 0 : index
    %c0_48 = arith.constant 0 : index
    %64 = vector.load %arg18[%c0_47, %c0_48] : memref<32x16xf32, #tpu.memory_space<vmem>>, vector<32x16xf32>
    tpu.vector_store %arg18[%c0_47, %c0_48], %22 {strides = array<i32>} : memref<32x16xf32, #tpu.memory_space<vmem>>, vector<32x16xf32>,
    %c0_49 = arith.constant 0 : index
    %c0_50 = arith.constant 0 : index
    %65 = vector.load %arg19[%c0_49, %c0_50] : memref<32x16xf32, #tpu.memory_space<vmem>>, vector<32x16xf32>
    tpu.vector_store %arg19[%c0_49, %c0_50], %32 {strides = array<i32>} : memref<32x16xf32, #tpu.memory_space<vmem>>, vector<32x16xf32>,
    return
  }
  func.func @transform_0(%arg0: i32) -> (i32, i32) {
    %c0_i32 = arith.constant 0 : i32
    %c0_i32_0 = arith.constant 0 : i32
    return %arg0, %c0_i32 : i32, i32
  }
  func.func @transform_1(%arg0: i32) -> (i32, i32) {
    %c0_i32 = arith.constant 0 : i32
    %c0_i32_0 = arith.constant 0 : i32
    return %arg0, %c0_i32 : i32, i32
  }
  func.func @transform_2(%arg0: i32) -> (i32, i32) {
    %c0_i32 = arith.constant 0 : i32
    %c0_i32_0 = arith.constant 0 : i32
    %c0_i32_1 = arith.constant 0 : i32
    return %c0_i32, %c0_i32_0 : i32, i32
  }
  func.func @transform_3(%arg0: i32) -> (i32, i32) {
    %c0_i32 = arith.constant 0 : i32
    %c0_i32_0 = arith.constant 0 : i32
    %c0_i32_1 = arith.constant 0 : i32
    return %c0_i32, %c0_i32_0 : i32, i32
  }
  func.func @transform_4(%arg0: i32) -> (i32, i32) {
    %c0_i32 = arith.constant 0 : i32
    %c0_i32_0 = arith.constant 0 : i32
    %c0_i32_1 = arith.constant 0 : i32
    return %c0_i32, %c0_i32_0 : i32, i32
  }
  func.func @transform_5(%arg0: i32) -> (i32, i32) {
    %c0_i32 = arith.constant 0 : i32
    %c0_i32_0 = arith.constant 0 : i32
    %c0_i32_1 = arith.constant 0 : i32
    return %c0_i32, %c0_i32_0 : i32, i32
  }
  func.func @transform_6(%arg0: i32) -> (i32, i32) {
    %c0_i32 = arith.constant 0 : i32
    %c0_i32_0 = arith.constant 0 : i32
    %c0_i32_1 = arith.constant 0 : i32
    return %c0_i32, %c0_i32_0 : i32, i32
  }
  func.func @transform_7(%arg0: i32) -> (i32, i32) {
    %c0_i32 = arith.constant 0 : i32
    %c0_i32_0 = arith.constant 0 : i32
    %c0_i32_1 = arith.constant 0 : i32
    return %c0_i32, %c0_i32_0 : i32, i32
  }
  func.func @transform_8(%arg0: i32) -> (i32, i32) {
    %c0_i32 = arith.constant 0 : i32
    %c0_i32_0 = arith.constant 0 : i32
    %c0_i32_1 = arith.constant 0 : i32
    return %c0_i32, %c0_i32_0 : i32, i32
  }
  func.func @transform_9(%arg0: i32) -> (i32, i32) {
    %c0_i32 = arith.constant 0 : i32
    %c0_i32_0 = arith.constant 0 : i32
    %c0_i32_1 = arith.constant 0 : i32
    return %c0_i32, %c0_i32_0 : i32, i32
  }
  func.func @transform_10(%arg0: i32) -> (i32, i32) {
    %c0_i32 = arith.constant 0 : i32
    %c0_i32_0 = arith.constant 0 : i32
    %c0_i32_1 = arith.constant 0 : i32
    return %c0_i32, %c0_i32_0 : i32, i32
  }
  func.func @transform_11(%arg0: i32) -> (i32, i32) {
    %c0_i32 = arith.constant 0 : i32
    %c0_i32_0 = arith.constant 0 : i32
    %c0_i32_1 = arith.constant 0 : i32
    return %c0_i32, %c0_i32_0 : i32, i32
  }
  func.func @transform_12(%arg0: i32) -> (i32, i32) {
    %c0_i32 = arith.constant 0 : i32
    %c0_i32_0 = arith.constant 0 : i32
    %c0_i32_1 = arith.constant 0 : i32
    return %c0_i32, %c0_i32_0 : i32, i32
  }
  func.func @transform_13(%arg0: i32) -> (i32, i32) {
    %c0_i32 = arith.constant 0 : i32
    %c0_i32_0 = arith.constant 0 : i32
    %c0_i32_1 = arith.constant 0 : i32
    return %c0_i32, %c0_i32_0 : i32, i32
  }
  func.func @transform_14(%arg0: i32) -> (i32, i32) {
    %c0_i32 = arith.constant 0 : i32
    %c0_i32_0 = arith.constant 0 : i32
    %c0_i32_1 = arith.constant 0 : i32
    return %c0_i32, %c0_i32_0 : i32, i32
  }
  func.func @transform_15(%arg0: i32) -> (i32, i32) {
    %c0_i32 = arith.constant 0 : i32
    %c0_i32_0 = arith.constant 0 : i32
    %c0_i32_1 = arith.constant 0 : i32
    return %c0_i32, %c0_i32_0 : i32, i32
  }
  func.func @transform_16(%arg0: i32) -> (i32, i32) {
    %c0_i32 = arith.constant 0 : i32
    %c0_i32_0 = arith.constant 0 : i32
    return %arg0, %c0_i32 : i32, i32
  }
  func.func @transform_17(%arg0: i32) -> (i32, i32) {
    %c0_i32 = arith.constant 0 : i32
    %c0_i32_0 = arith.constant 0 : i32
    return %arg0, %c0_i32 : i32, i32
  }
  func.func @transform_18(%arg0: i32) -> (i32, i32) {
    %c0_i32 = arith.constant 0 : i32
    %c0_i32_0 = arith.constant 0 : i32
    return %arg0, %c0_i32 : i32, i32
  }
}

</mosaic_0001>

<llo_original>
// kernel: tpu_custom_call.1
$region0: #{tpu_custom_call.1}
  #allocation0 [shape = 'u32[]', space=smem, size = 0x4, offset = 0x4, fixed_abs, tag = 'smem constant byte address 0x4 - core index']
  #allocation1 [shape = 'u32[144,128]{1,0:T(1,128)}', space=vmem, size = 0x12000, scoped, tag = 'internal scratch']
  %s0 = inlined_call_operand.vmem [shape: f32[64,64], index: 0, kind: input, shape index: {}]
  %s1 = inlined_call_operand.vmem [shape: f32[64,16], index: 1, kind: input, shape index: {}]
  %s2 = inlined_call_operand.hbm [shape: bf16[64,512], index: 2, kind: input, shape index: {}]
  %s3 = inlined_call_operand.vmem [shape: f32[1,512], index: 3, kind: input, shape index: {}]
  %s4 = inlined_call_operand.vmem [shape: bf16[512,256], index: 4, kind: input, shape index: {}]
  %s5 = inlined_call_operand.vmem [shape: f32[1,256], index: 5, kind: input, shape index: {}]
  %s6 = inlined_call_operand.vmem [shape: bf16[256,16], index: 6, kind: input, shape index: {}]
  %s7 = inlined_call_operand.vmem [shape: f32[1,16], index: 7, kind: input, shape index: {}]
  %s8 = inlined_call_operand.vmem [shape: bf16[256,16], index: 8, kind: input, shape index: {}]
  %s9 = inlined_call_operand.vmem [shape: f32[1,16], index: 9, kind: input, shape index: {}]
  %s10 = inlined_call_operand.vmem [shape: bf16[16,256], index: 10, kind: input, shape index: {}]
  %s11 = inlined_call_operand.vmem [shape: f32[1,256], index: 11, kind: input, shape index: {}]
  %s12 = inlined_call_operand.hbm [shape: bf16[256,512], index: 12, kind: input, shape index: {}]
  %s13 = inlined_call_operand.vmem [shape: f32[1,512], index: 13, kind: input, shape index: {}]
  %s14 = inlined_call_operand.vmem [shape: bf16[512,64], index: 14, kind: input, shape index: {}]
  %s15 = inlined_call_operand.vmem [shape: f32[1,64], index: 15, kind: input, shape index: {}]
  %s16 = inlined_call_operand.hbm [shape: f32[64,64], index: 16, kind: output, shape index: {0}]
  %s17 = inlined_call_operand.vmem [shape: f32[64,16], index: 17, kind: output, shape index: {1}]
  %s18 = inlined_call_operand.vmem [shape: f32[64,16], index: 18, kind: output, shape index: {2}]
  %19 = xla_tuple %s16, %s17, %s18
  %s20 = sld [smem:[#allocation0]]
  $region121: #{tpu_custom_call.1} parent=0
    _
  %s22 = ssub.s32 1, %s20
  %s23 = scalar_select 0, %s22, %s20
  $region1: #{tpu_custom_call.1} parent=0
    #allocation2 [shape = 'u8[65536]{0}', space=vmem, size = 0x10000, scoped, tag = 'input window, operand 2, single buffered']
    #allocation3 [shape = 's32[2]{0}', space=sflag, size = 0x8, scoped, tag = 'scoped memory for tpu_custom_call.1']
    #allocation4 [shape = 's32[2]{0}', space=sflag, size = 0x8, scoped, tag = 'scoped memory for tpu_custom_call.1']
    #allocation5 [shape = 'u8[262144]{0}', space=vmem, size = 0x40000, scoped, tag = 'input window, operand 12, single buffered']
    #allocation6 [shape = 's32[1]{0}', space=sflag, size = 0x4, scoped, tag = 'scoped memory for tpu_custom_call.1']
    #allocation7 [shape = 'u8[32768]{0}', space=vmem, size = 0x8000, scoped, tag = 'output window, operand 0']
    %24 = vsyncpa [#allocation3], 0
    %25 = vsyncpa [#allocation6], 0
    %26 = vsyncpa [#allocation4], 0
    %s27 = scalar_lea.sflag [#allocation4], 1
    %28 = vsyncpa %s27, 0
    loop: start=0, step=1, limit=4
    $region2: #{tpu_custom_call.1} parent=1 // loop_pre_header
      _
    $region3: #{tpu_custom_call.1} parent=1 // loop_header
      %s30 = sphi 0, %s34
      %p31 = scmp.ge.s32.totalorder %s30, 4
      %s40 = sphi 0, %s42
      %s43 = sphi 0, %s40
      %s44 = sphi 0, %s43
      %s60 = sphi 0, %s44
      %s66 = sphi 0, %s68
      %s69 = sphi 0, %s66
      %s70 = sphi 0, %s69
      %s86 = sphi 0, %s70
      %s90 = sphi 0, %s90
      %s92 = sphi 0, %s90
      %s93 = sphi 0, %s92
      %s107 = sphi 0, %s93
      %s111 = sphi 0, %s111
      %s113 = sphi 0, %s111
      %s114 = sphi 0, %s113
      %s128 = sphi 0, %s114
      %s132 = sphi 0, %s132
      %s134 = sphi 0, %s132
      %s135 = sphi 0, %s134
      %s149 = sphi 0, %s135
      %s153 = sphi 0, %s153
      %s155 = sphi 0, %s153
      %s156 = sphi 0, %s155
      %s170 = sphi 0, %s156
      %s174 = sphi 0, %s174
      %s176 = sphi 0, %s174
      %s177 = sphi 0, %s176
      %s191 = sphi 0, %s177
      %s195 = sphi 0, %s195
      %s197 = sphi 0, %s195
      %s198 = sphi 0, %s197
      %s212 = sphi 0, %s198
      %s216 = sphi 0, %s216
      %s218 = sphi 0, %s216
      %s219 = sphi 0, %s218
      %s233 = sphi 0, %s219
      %s237 = sphi 0, %s237
      %s239 = sphi 0, %s237
      %s240 = sphi 0, %s239
      %s254 = sphi 0, %s240
      %s258 = sphi 0, %s258
      %s260 = sphi 0, %s258
      %s261 = sphi 0, %s260
      %s275 = sphi 0, %s261
      %s279 = sphi 0, %s279
      %s281 = sphi 0, %s279
      %s282 = sphi 0, %s281
      %s296 = sphi 0, %s282
      %s300 = sphi 0, %s300
      %s302 = sphi 0, %s300
      %s303 = sphi 0, %s302
      %s317 = sphi 0, %s303
      %s321 = sphi 0, %s321
      %s323 = sphi 0, %s321
      %s324 = sphi 0, %s323
      %s338 = sphi 0, %s324
      %s342 = sphi 0, %s342
      %s344 = sphi 0, %s342
      %s345 = sphi 0, %s344
      %s359 = sphi 0, %s345
      %s363 = sphi 0, %s363
      %s365 = sphi 0, %s363
      %s366 = sphi 0, %s365
      %s380 = sphi 0, %s366
      %s386 = sphi 0, %s388
      %s389 = sphi 0, %s386
      %s390 = sphi 0, %s389
      %s406 = sphi 0, %s390
      %s412 = sphi 0, %s414
      %s415 = sphi 0, %s412
      %s416 = sphi 0, %s415
      %s432 = sphi 0, %s416
      %s438 = sphi 0, %s440
      %s441 = sphi 0, %s438
      %s442 = sphi 0, %s441
      %s458 = sphi 0, %s442
    $region4: #{tpu_custom_call.1} parent=1 // loop_header_branch
      %33 = sbr.rel (%p31) target = $region8
    $region5: #{tpu_custom_call.1} parent=1 // loop_body
      %s35 = ssub.s32 %s30, 1
      %s36 = ssub.s32 %s30, 2
      %s37 = sadd.s32 %s30, 1
      %s38 = ssub.s32 %s30, %s37
      %p39 = scmp.eq.s32.totalorder %s38, 0
      %s41 = sadd.s32 %s40, 1
      %s42 = scalar_select %p39, %s40, %s41
      %p45 = pneg %p39
      %p46 = scmp.eq.s32.totalorder %s30, 1
      %p47 = por %p45, %p46
      %p48 = scmp.ne.s32.totalorder %s40, %s43
      %p49 = scmp.eq.s32.totalorder %s30, 0
      %p50 = por %p48, %p49
      %p51 = scmp.ne.s32.totalorder %s40, %s43
      %p52 = scmp.eq.s32.totalorder %s35, 1
      %p53 = por %p51, %p52
      %p54 = scmp.ne.s32.totalorder %s43, %s44
      %p55 = scmp.eq.s32.totalorder %s35, 0
      %p56 = por %p54, %p55
      %p57 = scmp.ne.s32.totalorder %s43, %s44
      %p58 = scmp.eq.s32.totalorder %s36, 1
      %p59 = por %p57, %p58
      %p61 = scmp.ne.s32.totalorder %s44, %s60
      %p62 = scmp.eq.s32.totalorder %s36, 0
      %p63 = por %p61, %p62
      %s64 = ssub.s32 %s30, %s37
      %p65 = scmp.eq.s32.totalorder %s64, 0
      %s67 = sadd.s32 %s66, 1
      %s68 = scalar_select %p65, %s66, %s67
      %p71 = pneg %p65
      %p72 = scmp.eq.s32.totalorder %s30, 1
      %p73 = por %p71, %p72
      %p74 = scmp.ne.s32.totalorder %s66, %s69
      %p75 = scmp.eq.s32.totalorder %s30, 0
      %p76 = por %p74, %p75
      %p77 = scmp.ne.s32.totalorder %s66, %s69
      %p78 = scmp.eq.s32.totalorder %s35, 1
      %p79 = por %p77, %p78
      %p80 = scmp.ne.s32.totalorder %s69, %s70
      %p81 = scmp.eq.s32.totalorder %s35, 0
      %p82 = por %p80, %p81
      %p83 = scmp.ne.s32.totalorder %s69, %s70
      %p84 = scmp.eq.s32.totalorder %s36, 1
      %p85 = por %p83, %p84
      %p87 = scmp.ne.s32.totalorder %s70, %s86
      %p88 = scmp.eq.s32.totalorder %s36, 0
      %p89 = por %p87, %p88
      %s91 = sadd.s32 %s90, 1
      %p94 = scmp.eq.s32.totalorder %s30, 1
      %p95 = scmp.ne.s32.totalorder %s90, %s92
      %p96 = scmp.eq.s32.totalorder %s30, 0
      %p97 = por %p95, %p96
      %p98 = scmp.ne.s32.totalorder %s90, %s92
      %p99 = scmp.eq.s32.totalorder %s35, 1
      %p100 = por %p98, %p99
      %p101 = scmp.ne.s32.totalorder %s92, %s93
      %p102 = scmp.eq.s32.totalorder %s35, 0
      %p103 = por %p101, %p102
      %p104 = scmp.ne.s32.totalorder %s92, %s93
      %p105 = scmp.eq.s32.totalorder %s36, 1
      %p106 = por %p104, %p105
      %p108 = scmp.ne.s32.totalorder %s93, %s107
      %p109 = scmp.eq.s32.totalorder %s36, 0
      %p110 = por %p108, %p109
      %s112 = sadd.s32 %s111, 1
      %p115 = scmp.eq.s32.totalorder %s30, 1
      %p116 = scmp.ne.s32.totalorder %s111, %s113
      %p117 = scmp.eq.s32.totalorder %s30, 0
      %p118 = por %p116, %p117
      %p119 = scmp.ne.s32.totalorder %s111, %s113
      %p120 = scmp.eq.s32.totalorder %s35, 1
      %p121 = por %p119, %p120
      %p122 = scmp.ne.s32.totalorder %s113, %s114
      %p123 = scmp.eq.s32.totalorder %s35, 0
      %p124 = por %p122, %p123
      %p125 = scmp.ne.s32.totalorder %s113, %s114
      %p126 = scmp.eq.s32.totalorder %s36, 1
      %p127 = por %p125, %p126
      %p129 = scmp.ne.s32.totalorder %s114, %s128
      %p130 = scmp.eq.s32.totalorder %s36, 0
      %p131 = por %p129, %p130
      %s133 = sadd.s32 %s132, 1
      %p136 = scmp.eq.s32.totalorder %s30, 1
      %p137 = scmp.ne.s32.totalorder %s132, %s134
      %p138 = scmp.eq.s32.totalorder %s30, 0
      %p139 = por %p137, %p138
      %p140 = scmp.ne.s32.totalorder %s132, %s134
      %p141 = scmp.eq.s32.totalorder %s35, 1
      %p142 = por %p140, %p141
      %p143 = scmp.ne.s32.totalorder %s134, %s135
      %p144 = scmp.eq.s32.totalorder %s35, 0
      %p145 = por %p143, %p144
      %p146 = scmp.ne.s32.totalorder %s134, %s135
      %p147 = scmp.eq.s32.totalorder %s36, 1
      %p148 = por %p146, %p147
      %p150 = scmp.ne.s32.totalorder %s135, %s149
      %p151 = scmp.eq.s32.totalorder %s36, 0
      %p152 = por %p150, %p151
      %s154 = sadd.s32 %s153, 1
      %p157 = scmp.eq.s32.totalorder %s30, 1
      %p158 = scmp.ne.s32.totalorder %s153, %s155
      %p159 = scmp.eq.s32.totalorder %s30, 0
      %p160 = por %p158, %p159
      %p161 = scmp.ne.s32.totalorder %s153, %s155
      %p162 = scmp.eq.s32.totalorder %s35, 1
      %p163 = por %p161, %p162
      %p164 = scmp.ne.s32.totalorder %s155, %s156
      %p165 = scmp.eq.s32.totalorder %s35, 0
      %p166 = por %p164, %p165
      %p167 = scmp.ne.s32.totalorder %s155, %s156
      %p168 = scmp.eq.s32.totalorder %s36, 1
      %p169 = por %p167, %p168
      %p171 = scmp.ne.s32.totalorder %s156, %s170
      %p172 = scmp.eq.s32.totalorder %s36, 0
      %p173 = por %p171, %p172
      %s175 = sadd.s32 %s174, 1
      %p178 = scmp.eq.s32.totalorder %s30, 1
      %p179 = scmp.ne.s32.totalorder %s174, %s176
      %p180 = scmp.eq.s32.totalorder %s30, 0
      %p181 = por %p179, %p180
      %p182 = scmp.ne.s32.totalorder %s174, %s176
      %p183 = scmp.eq.s32.totalorder %s35, 1
      %p184 = por %p182, %p183
      %p185 = scmp.ne.s32.totalorder %s176, %s177
      %p186 = scmp.eq.s32.totalorder %s35, 0
      %p187 = por %p185, %p186
      %p188 = scmp.ne.s32.totalorder %s176, %s177
      %p189 = scmp.eq.s32.totalorder %s36, 1
      %p190 = por %p188, %p189
      %p192 = scmp.ne.s32.totalorder %s177, %s191
      %p193 = scmp.eq.s32.totalorder %s36, 0
      %p194 = por %p192, %p193
      %s196 = sadd.s32 %s195, 1
      %p199 = scmp.eq.s32.totalorder %s30, 1
      %p200 = scmp.ne.s32.totalorder %s195, %s197
      %p201 = scmp.eq.s32.totalorder %s30, 0
      %p202 = por %p200, %p201
      %p203 = scmp.ne.s32.totalorder %s195, %s197
      %p204 = scmp.eq.s32.totalorder %s35, 1
      %p205 = por %p203, %p204
      %p206 = scmp.ne.s32.totalorder %s197, %s198
      %p207 = scmp.eq.s32.totalorder %s35, 0
      %p208 = por %p206, %p207
      %p209 = scmp.ne.s32.totalorder %s197, %s198
      %p210 = scmp.eq.s32.totalorder %s36, 1
      %p211 = por %p209, %p210
      %p213 = scmp.ne.s32.totalorder %s198, %s212
      %p214 = scmp.eq.s32.totalorder %s36, 0
      %p215 = por %p213, %p214
      %s217 = sadd.s32 %s216, 1
      %p220 = scmp.eq.s32.totalorder %s30, 1
      %p221 = scmp.ne.s32.totalorder %s216, %s218
      %p222 = scmp.eq.s32.totalorder %s30, 0
      %p223 = por %p221, %p222
      %p224 = scmp.ne.s32.totalorder %s216, %s218
      %p225 = scmp.eq.s32.totalorder %s35, 1
      %p226 = por %p224, %p225
      %p227 = scmp.ne.s32.totalorder %s218, %s219
      %p228 = scmp.eq.s32.totalorder %s35, 0
      %p229 = por %p227, %p228
      %p230 = scmp.ne.s32.totalorder %s218, %s219
      %p231 = scmp.eq.s32.totalorder %s36, 1
      %p232 = por %p230, %p231
      %p234 = scmp.ne.s32.totalorder %s219, %s233
      %p235 = scmp.eq.s32.totalorder %s36, 0
      %p236 = por %p234, %p235
      %s238 = sadd.s32 %s237, 1
      %p241 = scmp.eq.s32.totalorder %s30, 1
      %p242 = scmp.ne.s32.totalorder %s237, %s239
      %p243 = scmp.eq.s32.totalorder %s30, 0
      %p244 = por %p242, %p243
      %p245 = scmp.ne.s32.totalorder %s237, %s239
      %p246 = scmp.eq.s32.totalorder %s35, 1
      %p247 = por %p245, %p246
      %p248 = scmp.ne.s32.totalorder %s239, %s240
      %p249 = scmp.eq.s32.totalorder %s35, 0
      %p250 = por %p248, %p249
      %p251 = scmp.ne.s32.totalorder %s239, %s240
      %p252 = scmp.eq.s32.totalorder %s36, 1
      %p253 = por %p251, %p252
      %p255 = scmp.ne.s32.totalorder %s240, %s254
      %p256 = scmp.eq.s32.totalorder %s36, 0
      %p257 = por %p255, %p256
      %s259 = sadd.s32 %s258, 1
      %p262 = scmp.eq.s32.totalorder %s30, 1
      %p263 = scmp.ne.s32.totalorder %s258, %s260
      %p264 = scmp.eq.s32.totalorder %s30, 0
      %p265 = por %p263, %p264
      %p266 = scmp.ne.s32.totalorder %s258, %s260
      %p267 = scmp.eq.s32.totalorder %s35, 1
      %p268 = por %p266, %p267
      %p269 = scmp.ne.s32.totalorder %s260, %s261
      %p270 = scmp.eq.s32.totalorder %s35, 0
      %p271 = por %p269, %p270
      %p272 = scmp.ne.s32.totalorder %s260, %s261
      %p273 = scmp.eq.s32.totalorder %s36, 1
      %p274 = por %p272, %p273
      %p276 = scmp.ne.s32.totalorder %s261, %s275
      %p277 = scmp.eq.s32.totalorder %s36, 0
      %p278 = por %p276, %p277
      %s280 = sadd.s32 %s279, 1
      %p283 = scmp.eq.s32.totalorder %s30, 1
      %p284 = scmp.ne.s32.totalorder %s279, %s281
      %p285 = scmp.eq.s32.totalorder %s30, 0
      %p286 = por %p284, %p285
      %p287 = scmp.ne.s32.totalorder %s279, %s281
      %p288 = scmp.eq.s32.totalorder %s35, 1
      %p289 = por %p287, %p288
      %p290 = scmp.ne.s32.totalorder %s281, %s282
      %p291 = scmp.eq.s32.totalorder %s35, 0
      %p292 = por %p290, %p291
      %p293 = scmp.ne.s32.totalorder %s281, %s282
      %p294 = scmp.eq.s32.totalorder %s36, 1
      %p295 = por %p293, %p294
      %p297 = scmp.ne.s32.totalorder %s282, %s296
      %p298 = scmp.eq.s32.totalorder %s36, 0
      %p299 = por %p297, %p298
      %s301 = sadd.s32 %s300, 1
      %p304 = scmp.eq.s32.totalorder %s30, 1
      %p305 = scmp.ne.s32.totalorder %s300, %s302
      %p306 = scmp.eq.s32.totalorder %s30, 0
      %p307 = por %p305, %p306
      %p308 = scmp.ne.s32.totalorder %s300, %s302
      %p309 = scmp.eq.s32.totalorder %s35, 1
      %p310 = por %p308, %p309
      %p311 = scmp.ne.s32.totalorder %s302, %s303
      %p312 = scmp.eq.s32.totalorder %s35, 0
      %p313 = por %p311, %p312
      %p314 = scmp.ne.s32.totalorder %s302, %s303
      %p315 = scmp.eq.s32.totalorder %s36, 1
      %p316 = por %p314, %p315
      %p318 = scmp.ne.s32.totalorder %s303, %s317
      %p319 = scmp.eq.s32.totalorder %s36, 0
      %p320 = por %p318, %p319
      %s322 = sadd.s32 %s321, 1
      %p325 = scmp.eq.s32.totalorder %s30, 1
      %p326 = scmp.ne.s32.totalorder %s321, %s323
      %p327 = scmp.eq.s32.totalorder %s30, 0
      %p328 = por %p326, %p327
      %p329 = scmp.ne.s32.totalorder %s321, %s323
      %p330 = scmp.eq.s32.totalorder %s35, 1
      %p331 = por %p329, %p330
      %p332 = scmp.ne.s32.totalorder %s323, %s324
      %p333 = scmp.eq.s32.totalorder %s35, 0
      %p334 = por %p332, %p333
      %p335 = scmp.ne.s32.totalorder %s323, %s324
      %p336 = scmp.eq.s32.totalorder %s36, 1
      %p337 = por %p335, %p336
      %p339 = scmp.ne.s32.totalorder %s324, %s338
      %p340 = scmp.eq.s32.totalorder %s36, 0
      %p341 = por %p339, %p340
      %s343 = sadd.s32 %s342, 1
      %p346 = scmp.eq.s32.totalorder %s30, 1
      %p347 = scmp.ne.s32.totalorder %s342, %s344
      %p348 = scmp.eq.s32.totalorder %s30, 0
      %p349 = por %p347, %p348
      %p350 = scmp.ne.s32.totalorder %s342, %s344
      %p351 = scmp.eq.s32.totalorder %s35, 1
      %p352 = por %p350, %p351
      %p353 = scmp.ne.s32.totalorder %s344, %s345
      %p354 = scmp.eq.s32.totalorder %s35, 0
      %p355 = por %p353, %p354
      %p356 = scmp.ne.s32.totalorder %s344, %s345
      %p357 = scmp.eq.s32.totalorder %s36, 1
      %p358 = por %p356, %p357
      %p360 = scmp.ne.s32.totalorder %s345, %s359
      %p361 = scmp.eq.s32.totalorder %s36, 0
      %p362 = por %p360, %p361
      %s364 = sadd.s32 %s363, 1
      %p367 = scmp.eq.s32.totalorder %s30, 1
      %p368 = scmp.ne.s32.totalorder %s363, %s365
      %p369 = scmp.eq.s32.totalorder %s30, 0
      %p370 = por %p368, %p369
      %p371 = scmp.ne.s32.totalorder %s363, %s365
      %p372 = scmp.eq.s32.totalorder %s35, 1
      %p373 = por %p371, %p372
      %p374 = scmp.ne.s32.totalorder %s365, %s366
      %p375 = scmp.eq.s32.totalorder %s35, 0
      %p376 = por %p374, %p375
      %p377 = scmp.ne.s32.totalorder %s365, %s366
      %p378 = scmp.eq.s32.totalorder %s36, 1
      %p379 = por %p377, %p378
      %p381 = scmp.ne.s32.totalorder %s366, %s380
      %p382 = scmp.eq.s32.totalorder %s36, 0
      %p383 = por %p381, %p382
      %s384 = ssub.s32 %s30, %s37
      %p385 = scmp.eq.s32.totalorder %s384, 0
      %s387 = sadd.s32 %s386, 1
      %s388 = scalar_select %p385, %s386, %s387
      %p391 = pneg %p385
      %p392 = scmp.eq.s32.totalorder %s30, 1
      %p393 = por %p391, %p392
      %p394 = scmp.ne.s32.totalorder %s386, %s389
      %p395 = scmp.eq.s32.totalorder %s30, 0
      %p396 = por %p394, %p395
      %p397 = scmp.ne.s32.totalorder %s386, %s389
      %p398 = scmp.eq.s32.totalorder %s35, 1
      %p399 = por %p397, %p398
      %p400 = scmp.ne.s32.totalorder %s389, %s390
      %p401 = scmp.eq.s32.totalorder %s35, 0
      %p402 = por %p400, %p401
      %p403 = scmp.ne.s32.totalorder %s389, %s390
      %p404 = scmp.eq.s32.totalorder %s36, 1
      %p405 = por %p403, %p404
      %p407 = scmp.ne.s32.totalorder %s390, %s406
      %p408 = scmp.eq.s32.totalorder %s36, 0
      %p409 = por %p407, %p408
      %s410 = ssub.s32 %s30, %s37
      %p411 = scmp.eq.s32.totalorder %s410, 0
      %s413 = sadd.s32 %s412, 1
      %s414 = scalar_select %p411, %s412, %s413
      %p417 = pneg %p411
      %p418 = scmp.eq.s32.totalorder %s30, 1
      %p419 = por %p417, %p418
      %p420 = scmp.ne.s32.totalorder %s412, %s415
      %p421 = scmp.eq.s32.totalorder %s30, 0
      %p422 = por %p420, %p421
      %p423 = scmp.ne.s32.totalorder %s412, %s415
      %p424 = scmp.eq.s32.totalorder %s35, 1
      %p425 = por %p423, %p424
      %p426 = scmp.ne.s32.totalorder %s415, %s416
      %p427 = scmp.eq.s32.totalorder %s35, 0
      %p428 = por %p426, %p427
      %p429 = scmp.ne.s32.totalorder %s415, %s416
      %p430 = scmp.eq.s32.totalorder %s36, 1
      %p431 = por %p429, %p430
      %p433 = scmp.ne.s32.totalorder %s416, %s432
      %p434 = scmp.eq.s32.totalorder %s36, 0
      %p435 = por %p433, %p434
      %s436 = ssub.s32 %s30, %s37
      %p437 = scmp.eq.s32.totalorder %s436, 0
      %s439 = sadd.s32 %s438, 1
      %s440 = scalar_select %p437, %s438, %s439
      %p443 = pneg %p437
      %p444 = scmp.eq.s32.totalorder %s30, 1
      %p445 = por %p443, %p444
      %p446 = scmp.ne.s32.totalorder %s438, %s441
      %p447 = scmp.eq.s32.totalorder %s30, 0
      %p448 = por %p446, %p447
      %p449 = scmp.ne.s32.totalorder %s438, %s441
      %p450 = scmp.eq.s32.totalorder %s35, 1
      %p451 = por %p449, %p450
      %p452 = scmp.ne.s32.totalorder %s441, %s442
      %p453 = scmp.eq.s32.totalorder %s35, 0
      %p454 = por %p452, %p453
      %p455 = scmp.ne.s32.totalorder %s441, %s442
      %p456 = scmp.eq.s32.totalorder %s36, 1
      %p457 = por %p455, %p456
      %p459 = scmp.ne.s32.totalorder %s442, %s458
      %p460 = scmp.eq.s32.totalorder %s36, 0
      %p461 = por %p459, %p460
      %p462 = scmp.le.s32.totalorder 1, %s30
      %p463 = scmp.lt.s32.totalorder %s30, 3
      %p464 = pnand %p462, %p463
      %p465 = pneg %p464
      // Predicated region
      $region9: #{tpu_custom_call.1} parent=5 // pred_check
        _
      $region10: #{tpu_custom_call.1} parent=5 // pred_check_branch
        %467 = sbr.rel (%p464) target = $region12
      $region11: #{tpu_custom_call.1} parent=5 // pred_region
        %s468 = ssub.s32 %s30, 1
        // Predicated region
        $region13: #{tpu_custom_call.1} parent=11 // pred_check
          %p469 = pneg %p103
        $region14: #{tpu_custom_call.1} parent=11 // pred_check_branch
          %471 = sbr.rel (%p469) target = $region16
        $region15: #{tpu_custom_call.1} parent=11 // pred_region
          %s473 = ssub.s32 2048, 2048
          %474 = vsyncadd [#allocation3], %s473
          %s475 = sshll.u32 [#allocation2], 4
          %s476 = int_to_ptr.vmem [resolvable:$true] %s475
          %481 = dma.hbm_to_vmem [thread:$0]  %s2, 2048, %s476, [#allocation3], 256, 256, 16
        $region16: #{tpu_custom_call.1} parent=11 // pred_fallthru
          _
        // Predicated region
        $region17: #{tpu_custom_call.1} parent=11 // pred_check
          %p482 = pneg %p124
        $region18: #{tpu_custom_call.1} parent=11 // pred_check_branch
          %484 = sbr.rel (%p482) target = $region20
        $region19: #{tpu_custom_call.1} parent=11 // pred_region
          _
        $region20: #{tpu_custom_call.1} parent=11 // pred_fallthru
          _
        // Predicated region
        $region21: #{tpu_custom_call.1} parent=11 // pred_check
          %p485 = pneg %p145
        $region22: #{tpu_custom_call.1} parent=11 // pred_check_branch
          %487 = sbr.rel (%p485) target = $region24
        $region23: #{tpu_custom_call.1} parent=11 // pred_region
          _
        $region24: #{tpu_custom_call.1} parent=11 // pred_fallthru
          _
        // Predicated region
        $region25: #{tpu_custom_call.1} parent=11 // pred_check
          %p488 = pneg %p166
        $region26: #{tpu_custom_call.1} parent=11 // pred_check_branch
          %490 = sbr.rel (%p488) target = $region28
        $region27: #{tpu_custom_call.1} parent=11 // pred_region
          _
        $region28: #{tpu_custom_call.1} parent=11 // pred_fallthru
          _
        // Predicated region
        $region29: #{tpu_custom_call.1} parent=11 // pred_check
          %p491 = pneg %p187
        $region30: #{tpu_custom_call.1} parent=11 // pred_check_branch
          %493 = sbr.rel (%p491) target = $region32
        $region31: #{tpu_custom_call.1} parent=11 // pred_region
          _
        $region32: #{tpu_custom_call.1} parent=11 // pred_fallthru
          _
        // Predicated region
        $region33: #{tpu_custom_call.1} parent=11 // pred_check
          %p494 = pneg %p208
        $region34: #{tpu_custom_call.1} parent=11 // pred_check_branch
          %496 = sbr.rel (%p494) target = $region36
        $region35: #{tpu_custom_call.1} parent=11 // pred_region
          _
        $region36: #{tpu_custom_call.1} parent=11 // pred_fallthru
          _
        // Predicated region
        $region37: #{tpu_custom_call.1} parent=11 // pred_check
          %p497 = pneg %p229
        $region38: #{tpu_custom_call.1} parent=11 // pred_check_branch
          %499 = sbr.rel (%p497) target = $region40
        $region39: #{tpu_custom_call.1} parent=11 // pred_region
          _
        $region40: #{tpu_custom_call.1} parent=11 // pred_fallthru
          _
        // Predicated region
        $region41: #{tpu_custom_call.1} parent=11 // pred_check
          %p500 = pneg %p250
        $region42: #{tpu_custom_call.1} parent=11 // pred_check_branch
          %502 = sbr.rel (%p500) target = $region44
        $region43: #{tpu_custom_call.1} parent=11 // pred_region
          _
        $region44: #{tpu_custom_call.1} parent=11 // pred_fallthru
          _
        // Predicated region
        $region45: #{tpu_custom_call.1} parent=11 // pred_check
          %p503 = pneg %p271
        $region46: #{tpu_custom_call.1} parent=11 // pred_check_branch
          %505 = sbr.rel (%p503) target = $region48
        $region47: #{tpu_custom_call.1} parent=11 // pred_region
          _
        $region48: #{tpu_custom_call.1} parent=11 // pred_fallthru
          _
        // Predicated region
        $region49: #{tpu_custom_call.1} parent=11 // pred_check
          %p506 = pneg %p292
        $region50: #{tpu_custom_call.1} parent=11 // pred_check_branch
          %508 = sbr.rel (%p506) target = $region52
        $region51: #{tpu_custom_call.1} parent=11 // pred_region
          _
        $region52: #{tpu_custom_call.1} parent=11 // pred_fallthru
          _
        // Predicated region
        $region53: #{tpu_custom_call.1} parent=11 // pred_check
          %p509 = pneg %p313
        $region54: #{tpu_custom_call.1} parent=11 // pred_check_branch
          %511 = sbr.rel (%p509) target = $region56
        $region55: #{tpu_custom_call.1} parent=11 // pred_region
          %s513 = ssub.s32 8192, 8192
          %514 = vsyncadd [#allocation6], %s513
          %s515 = sshll.u32 [#allocation5], 4
          %s516 = int_to_ptr.vmem [resolvable:$true] %s515
          %521 = dma.hbm_to_vmem [thread:$0]  %s12, 8192, %s516, [#allocation6], 256, 256, 16
        $region56: #{tpu_custom_call.1} parent=11 // pred_fallthru
          _
        // Predicated region
        $region57: #{tpu_custom_call.1} parent=11 // pred_check
          %p522 = pneg %p334
        $region58: #{tpu_custom_call.1} parent=11 // pred_check_branch
          %524 = sbr.rel (%p522) target = $region60
        $region59: #{tpu_custom_call.1} parent=11 // pred_region
          _
        $region60: #{tpu_custom_call.1} parent=11 // pred_fallthru
          _
        // Predicated region
        $region61: #{tpu_custom_call.1} parent=11 // pred_check
          %p525 = pneg %p355
        $region62: #{tpu_custom_call.1} parent=11 // pred_check_branch
          %527 = sbr.rel (%p525) target = $region64
        $region63: #{tpu_custom_call.1} parent=11 // pred_region
          _
        $region64: #{tpu_custom_call.1} parent=11 // pred_fallthru
          _
        // Predicated region
        $region65: #{tpu_custom_call.1} parent=11 // pred_check
          %p528 = pneg %p376
        $region66: #{tpu_custom_call.1} parent=11 // pred_check_branch
          %530 = sbr.rel (%p528) target = $region68
        $region67: #{tpu_custom_call.1} parent=11 // pred_region
          _
        $region68: #{tpu_custom_call.1} parent=11 // pred_fallthru
          _
      $region12: #{tpu_custom_call.1} parent=5 // pred_fallthru
        _
      %p531 = scmp.lt.s32.totalorder %s30, 2
      // Predicated region
      $region69: #{tpu_custom_call.1} parent=5 // pred_check
        %p532 = pneg %p531
      $region70: #{tpu_custom_call.1} parent=5 // pred_check_branch
        %534 = sbr.rel (%p532) target = $region72
      $region71: #{tpu_custom_call.1} parent=5 // pred_region
        // Predicated region
        $region73: #{tpu_custom_call.1} parent=71 // pred_check
          %p535 = pneg %p50
        $region74: #{tpu_custom_call.1} parent=71 // pred_check_branch
          %537 = sbr.rel (%p535) target = $region76
        $region75: #{tpu_custom_call.1} parent=71 // pred_region
          %s538 = smul.u32 4, %s30
          %p539 = scmp.lt.s32.totalorder %s538, 7
          %s540 = scalar_select %p539, %s538, 7
          %s541 = smul.addr %s540, 8
          %s542 = scalar_lea.vmem %s0, %s541
          %s543 = smul.u32 4, %s30
        $region76: #{tpu_custom_call.1} parent=71 // pred_fallthru
          _
        // Predicated region
        $region77: #{tpu_custom_call.1} parent=71 // pred_check
          %p544 = pneg %p76
        $region78: #{tpu_custom_call.1} parent=71 // pred_check_branch
          %546 = sbr.rel (%p544) target = $region80
        $region79: #{tpu_custom_call.1} parent=71 // pred_region
          %s547 = smul.u32 4, %s30
          %p548 = scmp.lt.s32.totalorder %s547, 7
          %s549 = scalar_select %p548, %s547, 7
          %s550 = smul.addr %s549, 8
          %s551 = scalar_lea.vmem %s1, %s550
          %s552 = smul.u32 4, %s30
        $region80: #{tpu_custom_call.1} parent=71 // pred_fallthru
          _
      $region72: #{tpu_custom_call.1} parent=5 // pred_fallthru
        _
      %p553 = scmp.le.s32.totalorder 1, %s30
      %p554 = scmp.lt.s32.totalorder %s30, 3
      %p555 = pnand %p553, %p554
      %p556 = pneg %p555
      // Predicated region
      $region81: #{tpu_custom_call.1} parent=5 // pred_check
        _
      $region82: #{tpu_custom_call.1} parent=5 // pred_check_branch
        %558 = sbr.rel (%p555) target = $region84
      $region83: #{tpu_custom_call.1} parent=5 // pred_region
        %s559 = ssub.s32 %s30, 1
        // Predicated region
        $region85: #{tpu_custom_call.1} parent=83 // pred_check
          %p560 = pneg %p103
        $region86: #{tpu_custom_call.1} parent=83 // pred_check_branch
          %562 = sbr.rel (%p560) target = $region88
        $region87: #{tpu_custom_call.1} parent=83 // pred_region
          %563 = dma.done [#allocation3], 2048
        $region88: #{tpu_custom_call.1} parent=83 // pred_fallthru
          _
        // Predicated region
        $region89: #{tpu_custom_call.1} parent=83 // pred_check
          %p564 = pneg %p313
        $region90: #{tpu_custom_call.1} parent=83 // pred_check_branch
          %566 = sbr.rel (%p564) target = $region92
        $region91: #{tpu_custom_call.1} parent=83 // pred_region
          %567 = dma.done [#allocation6], 8192
        $region92: #{tpu_custom_call.1} parent=83 // pred_fallthru
          _
        %s568 = smul.u32 4, %s35
        %p569 = scmp.lt.s32.totalorder %s568, 7
        %s570 = scalar_select %p569, %s568, 7
        %s571 = smul.addr %s570, 8
        %s572 = scalar_lea.vmem %s0, %s571
        %p573 = pneg %p56
        %p574 = pneg %p53
        %s575 = smul.u32 4, %s35
        %p576 = scmp.lt.s32.totalorder %s575, 7
        %s577 = scalar_select %p576, %s575, 7
        %s578 = smul.addr %s577, 8
        %s579 = scalar_lea.vmem %s1, %s578
        %p580 = pneg %p82
        %p581 = pneg %p79
        %p582 = pneg %p103
        %p583 = pneg %p100
        %p584 = pneg %p124
        %p585 = pneg %p121
        %p586 = pneg %p145
        %p587 = pneg %p142
        %p588 = pneg %p166
        %p589 = pneg %p163
        %p590 = pneg %p187
        %p591 = pneg %p184
        %p592 = pneg %p208
        %p593 = pneg %p205
        %p594 = pneg %p229
        %p595 = pneg %p226
        %p596 = pneg %p250
        %p597 = pneg %p247
        %p598 = pneg %p271
        %p599 = pneg %p268
        %p600 = pneg %p292
        %p601 = pneg %p289
        %p602 = pneg %p313
        %p603 = pneg %p310
        %p604 = pneg %p334
        %p605 = pneg %p331
        %p606 = pneg %p355
        %p607 = pneg %p352
        %p608 = pneg %p376
        %p609 = pneg %p373
        %p610 = pneg %p402
        %p611 = pneg %p399
        %s612 = sand.u32 %s389, 1
        %s613 = scalar_lea.sflag [#allocation4], %s612
        %s614 = sand.u32 %s389, 1
        %s615 = smul.addr %s614, 32
        %s616 = scalar_lea.vmem [#allocation7], %s615
        %p617 = pneg %p428
        %p618 = pneg %p425
        %s619 = smul.u32 4, %s35
        %p620 = scmp.lt.s32.totalorder %s619, 7
        %s621 = scalar_select %p620, %s619, 7
        %s622 = smul.addr %s621, 8
        %s623 = scalar_lea.vmem %s17, %s622
        %p624 = pneg %p454
        %p625 = pneg %p451
        %s626 = smul.u32 4, %s35
        %p627 = scmp.lt.s32.totalorder %s626, 7
        %s628 = scalar_select %p627, %s626, 7
        %s629 = smul.addr %s628, 8
        %s630 = scalar_lea.vmem %s18, %s629
        %s631 = smul.u32 4, %s35
        %p632 = scmp.lt.s32.totalorder %s631, 7
        %s633 = scalar_select %p632, %s631, 7
        %s634 = smul.addr %s633, 8
        %s635 = scalar_lea.vmem %s0, %s634
        %s636 = smul.u32 4, %s35
        %s637 = smul.u32 4, %s35
        %p638 = scmp.lt.s32.totalorder %s637, 7
        %s639 = scalar_select %p638, %s637, 7
        %s640 = smul.addr %s639, 8
        %s641 = scalar_lea.vmem %s1, %s640
        %s642 = smul.u32 4, %s35
        %s643 = smul.u32 4, %s35
        %s644 = smul.u32 4, %s35
        %p645 = scmp.lt.s32.totalorder %s644, 7
        %s646 = scalar_select %p645, %s644, 7
        %s647 = smul.addr %s646, 8
        %s648 = scalar_lea.vmem %s17, %s647
        %s649 = smul.u32 4, %s35
        %s650 = smul.u32 4, %s35
        %p651 = scmp.lt.s32.totalorder %s650, 7
        %s652 = scalar_select %p651, %s650, 7
        %s653 = smul.addr %s652, 8
        %s654 = scalar_lea.vmem %s18, %s653
        %s655 = smul.u32 4, %s35
        %v657 = vld [vmem:[%s635] sm:$0xff]
        %v658 = vld [vmem:[%s635 + $0x8] sm:$0xff]
        %v659 = vld [vmem:[%s635 + $0x10] sm:$0xff]
        %v660 = vld [vmem:[%s635 + $0x18] sm:$0xff]
        %v661 = vpack.c.bf16 %v658, %v657
        %v662 = vpack.c.bf16 %v660, %v659
        %v663 = vld [vmem:[#allocation2] sm:$0xff]
        %v664 = vld [vmem:[#allocation2 + $0x8] sm:$0xff]
        %v665 = vld [vmem:[#allocation2 + $0x10] sm:$0xff]
        %v666 = vld [vmem:[#allocation2 + $0x18] sm:$0xff]
        %v667 = vld [vmem:[#allocation2 + $0x20] sm:$0xff]
        %v668 = vld [vmem:[#allocation2 + $0x28] sm:$0xff]
        %v669 = vld [vmem:[#allocation2 + $0x30] sm:$0xff]
        %v670 = vld [vmem:[#allocation2 + $0x38] sm:$0xff]
        %v671 = vld [vmem:[#allocation2 + $0x40] sm:$0xff]
        %v672 = vld [vmem:[#allocation2 + $0x48] sm:$0xff]
        %v673 = vld [vmem:[#allocation2 + $0x50] sm:$0xff]
        %v674 = vld [vmem:[#allocation2 + $0x58] sm:$0xff]
        %v675 = vld [vmem:[#allocation2 + $0x60] sm:$0xff]
        %v676 = vld [vmem:[#allocation2 + $0x68] sm:$0xff]
        %v677 = vld [vmem:[#allocation2 + $0x70] sm:$0xff]
        %v678 = vld [vmem:[#allocation2 + $0x78] sm:$0xff]
        %v679 = vld [vmem:[%s3] sm:$0xf]
        %v681 = vlaneseq
        %v682 = vshrl.u32 %v681, 7
        %v683 = vsub.s32 0, %v682
        %v684 = vrot.slane %v679, %v683
        %v685 = vlaneseq
        %v686 = vshrl.u32 %v685, 7
        %v687 = vsub.s32 1, %v686
        %v688 = vrot.slane %v679, %v687
        %v689 = vlaneseq
        %v690 = vshrl.u32 %v689, 7
        %v691 = vsub.s32 2, %v690
        %v692 = vrot.slane %v679, %v691
        %v693 = vlaneseq
        %v694 = vshrl.u32 %v693, 7
        %v695 = vsub.s32 3, %v694
        %v696 = vrot.slane %v679, %v695
        %v717 = vunpack.c.l.b16 %v663
        %v718 = vunpack.c.h.b16 %v663
        %v719 = vunpack.c.l.b16 %v664
        %v720 = vunpack.c.h.b16 %v664
        %v721 = vunpack.c.l.b16 %v665
        %v722 = vunpack.c.h.b16 %v665
        %v723 = vunpack.c.l.b16 %v666
        %v724 = vunpack.c.h.b16 %v666
        %v725 = vunpack.c.l.b16 %v667
        %v726 = vunpack.c.h.b16 %v667
        %v727 = vunpack.c.l.b16 %v668
        %v728 = vunpack.c.h.b16 %v668
        %v729 = vunpack.c.l.b16 %v669
        %v730 = vunpack.c.h.b16 %v669
        %v731 = vunpack.c.l.b16 %v670
        %v732 = vunpack.c.h.b16 %v670
        %v733 = vunpack.c.l.b16 %v671
        %v734 = vunpack.c.h.b16 %v671
        %v735 = vunpack.c.l.b16 %v672
        %v736 = vunpack.c.h.b16 %v672
        %v737 = vunpack.c.l.b16 %v673
        %v738 = vunpack.c.h.b16 %v673
        %v739 = vunpack.c.l.b16 %v674
        %v740 = vunpack.c.h.b16 %v674
        %v741 = vunpack.c.l.b16 %v675
        %v742 = vunpack.c.h.b16 %v675
        %v743 = vunpack.c.l.b16 %v676
        %v744 = vunpack.c.h.b16 %v676
        %v745 = vunpack.c.l.b16 %v677
        %v746 = vunpack.c.h.b16 %v677
        %v747 = vunpack.c.l.b16 %v678
        %v748 = vunpack.c.h.b16 %v678
        %v749 = vpack.c.b16 %v721, %v717
        %v750 = vpack.c.b16 %v722, %v718
        %v751 = vpack.c.b16 %v723, %v719
        %v752 = vpack.c.b16 %v724, %v720
        %v753 = vpack.c.b16 %v729, %v725
        %v754 = vpack.c.b16 %v730, %v726
        %v755 = vpack.c.b16 %v731, %v727
        %v756 = vpack.c.b16 %v732, %v728
        %v757 = vpack.c.b16 %v737, %v733
        %v758 = vpack.c.b16 %v738, %v734
        %v759 = vpack.c.b16 %v739, %v735
        %v760 = vpack.c.b16 %v740, %v736
        %v761 = vpack.c.b16 %v745, %v741
        %v762 = vpack.c.b16 %v746, %v742
        %v763 = vpack.c.b16 %v747, %v743
        %v764 = vpack.c.b16 %v748, %v744
        %vm781 = vcmask 523264
        %v783 = vsel %vm781, %v661, 0
        %v786 = vsel %vm781, %v662, 0
        %788 = vmatprep.subr.bf16.mxu0 0
        %789 = vmatpush1.bf16.msra.mxu0 0
        %790 = vmatprep.subr.bf16.mxu0 0
        %791 = vmatpush1.bf16.msra.mxu0 0
        %792 = vmatprep.subr.bf16.mxu0 0
        %793 = vmatpush1.bf16.msra.mxu0 0
        %794 = vmatprep.subr.bf16.mxu0 0
        %795 = vmatpush1.bf16.msra.mxu0 0
        %796 = vmatprep.subr.bf16.mxu0 %v762
        %797 = vmatpush1.bf16.msra.mxu0 %v761
        %798 = vmatprep.subr.bf16.mxu0 %v758
        %799 = vmatpush1.bf16.msra.mxu0 %v757
        %800 = vmatprep.subr.bf16.mxu0 %v754
        %801 = vmatpush1.bf16.msra.mxu0 %v753
        %802 = vmatprep.subr.bf16.mxu0 %v750
        %803 = vmatpush1.bf16.msra.mxu0 %v749
        %804 = vmatprep.subr.bf16.mxu0 0
        %805 = vmatpush2.bf16.msra.mxu0 0
        %806 = vmatprep.subr.bf16.mxu0 0
        %807 = vmatpush2.bf16.msra.mxu0 0
        %808 = vmatprep.subr.bf16.mxu0 0
        %809 = vmatpush2.bf16.msra.mxu0 0
        %810 = vmatprep.subr.bf16.mxu0 0
        %811 = vmatpush2.bf16.msra.mxu0 0
        %812 = vmatprep.subr.bf16.mxu0 0
        %813 = vmatpush2.bf16.msra.mxu0 0
        %814 = vmatprep.subr.bf16.mxu0 0
        %815 = vmatpush2.bf16.msra.mxu0 0
        %816 = vmatprep.subr.bf16.mxu0 0
        %817 = vmatpush2.bf16.msra.mxu0 0
        %818 = vmatprep.subr.bf16.mxu0 0
        %819 = vmatpush2.bf16.msra.mxu0 0
        %820 = vmatprep.mubr.bf16.mxu0 0
        %821 = vmatmul.mubr.bf16.gmra.mxu0 %v783
        %v822 = vpop.f32.mrf.mxu0
        %v823 = vadd.f32 %v684, %v822
        %v824 = vpop.f32.mrf.mxu0
        %v825 = vadd.f32 %v688, %v824
        %v826 = vpop.f32.mrf.mxu0
        %v827 = vadd.f32 %v684, %v826
        %v828 = vpop.f32.mrf.mxu0
        %v829 = vadd.f32 %v688, %v828
        %830 = vmatprep.mubr.bf16.mxu0 0
        %831 = vmatmul.mubr.bf16.gmra.mxu0 %v786
        %v832 = vpop.f32.mrf.mxu0
        %v833 = vadd.f32 %v684, %v832
        %v834 = vpop.f32.mrf.mxu0
        %v835 = vadd.f32 %v688, %v834
        %v836 = vpop.f32.mrf.mxu0
        %v837 = vadd.f32 %v684, %v836
        %v838 = vpop.f32.mrf.mxu0
        %v839 = vadd.f32 %v688, %v838
        %840 = vdwg.mxu0
        %841 = vmatprep.subr.bf16.mxu0 0
        %842 = vmatpush1.bf16.msra.mxu0 0
        %843 = vmatprep.subr.bf16.mxu0 0
        %844 = vmatpush1.bf16.msra.mxu0 0
        %845 = vmatprep.subr.bf16.mxu0 0
        %846 = vmatpush1.bf16.msra.mxu0 0
        %847 = vmatprep.subr.bf16.mxu0 0
        %848 = vmatpush1.bf16.msra.mxu0 0
        %849 = vmatprep.subr.bf16.mxu0 %v764
        %850 = vmatpush1.bf16.msra.mxu0 %v763
        %851 = vmatprep.subr.bf16.mxu0 %v760
        %852 = vmatpush1.bf16.msra.mxu0 %v759
        %853 = vmatprep.subr.bf16.mxu0 %v756
        %854 = vmatpush1.bf16.msra.mxu0 %v755
        %855 = vmatprep.subr.bf16.mxu0 %v752
        %856 = vmatpush1.bf16.msra.mxu0 %v751
        %857 = vmatprep.subr.bf16.mxu0 0
        %858 = vmatpush2.bf16.msra.mxu0 0
        %859 = vmatprep.subr.bf16.mxu0 0
        %860 = vmatpush2.bf16.msra.mxu0 0
        %861 = vmatprep.subr.bf16.mxu0 0
        %862 = vmatpush2.bf16.msra.mxu0 0
        %863 = vmatprep.subr.bf16.mxu0 0
        %864 = vmatpush2.bf16.msra.mxu0 0
        %865 = vmatprep.subr.bf16.mxu0 0
        %866 = vmatpush2.bf16.msra.mxu0 0
        %867 = vmatprep.subr.bf16.mxu0 0
        %868 = vmatpush2.bf16.msra.mxu0 0
        %869 = vmatprep.subr.bf16.mxu0 0
        %870 = vmatpush2.bf16.msra.mxu0 0
        %871 = vmatprep.subr.bf16.mxu0 0
        %872 = vmatpush2.bf16.msra.mxu0 0
        %873 = vmatprep.mubr.bf16.mxu0 0
        %874 = vmatmul.mubr.bf16.gmra.mxu0 %v783
        %v875 = vpop.f32.mrf.mxu0
        %v876 = vadd.f32 %v692, %v875
        %v877 = vpop.f32.mrf.mxu0
        %v878 = vadd.f32 %v696, %v877
        %v879 = vpop.f32.mrf.mxu0
        %v880 = vadd.f32 %v692, %v879
        %v881 = vpop.f32.mrf.mxu0
        %v882 = vadd.f32 %v696, %v881
        %883 = vmatprep.mubr.bf16.mxu0 0
        %884 = vmatmul.mubr.bf16.gmra.mxu0 %v786
        %v885 = vpop.f32.mrf.mxu0
        %v886 = vadd.f32 %v692, %v885
        %v887 = vpop.f32.mrf.mxu0
        %v888 = vadd.f32 %v696, %v887
        %v889 = vpop.f32.mrf.mxu0
        %v890 = vadd.f32 %v692, %v889
        %v891 = vpop.f32.mrf.mxu0
        %v892 = vadd.f32 %v696, %v891
        %893 = vdwg.mxu0
        %v894 = vmax.f32 %v823, 0.0
        %v895 = vmax.f32 %v825, 0.0
        %v896 = vmax.f32 %v876, 0.0
        %v897 = vmax.f32 %v878, 0.0
        %v898 = vmax.f32 %v827, 0.0
        %v899 = vmax.f32 %v829, 0.0
        %v900 = vmax.f32 %v880, 0.0
        %v901 = vmax.f32 %v882, 0.0
        %v902 = vmax.f32 %v833, 0.0
        %v903 = vmax.f32 %v835, 0.0
        %v904 = vmax.f32 %v886, 0.0
        %v905 = vmax.f32 %v888, 0.0
        %v906 = vmax.f32 %v837, 0.0
        %v907 = vmax.f32 %v839, 0.0
        %v908 = vmax.f32 %v890, 0.0
        %v909 = vmax.f32 %v892, 0.0
        %v910 = vpack.c.bf16 %v898, %v894
        %v911 = vpack.c.bf16 %v899, %v895
        %v912 = vpack.c.bf16 %v900, %v896
        %v913 = vpack.c.bf16 %v901, %v897
        %v914 = vpack.c.bf16 %v906, %v902
        %v915 = vpack.c.bf16 %v907, %v903
        %v916 = vpack.c.bf16 %v908, %v904
        %v917 = vpack.c.bf16 %v909, %v905
        %v918 = vld [vmem:[%s4] sm:$0xff]
        %v919 = vld [vmem:[%s4 + $0x8] sm:$0xff]
        %v920 = vld [vmem:[%s4 + $0x10] sm:$0xff]
        %v921 = vld [vmem:[%s4 + $0x18] sm:$0xff]
        %v922 = vld [vmem:[%s4 + $0x20] sm:$0xff]
        %v923 = vld [vmem:[%s4 + $0x28] sm:$0xff]
        %v924 = vld [vmem:[%s4 + $0x30] sm:$0xff]
        %v925 = vld [vmem:[%s4 + $0x38] sm:$0xff]
        %v926 = vld [vmem:[%s4 + $0x40] sm:$0xff]
        %v927 = vld [vmem:[%s4 + $0x48] sm:$0xff]
        %v928 = vld [vmem:[%s4 + $0x50] sm:$0xff]
        %v929 = vld [vmem:[%s4 + $0x58] sm:$0xff]
        %v930 = vld [vmem:[%s4 + $0x60] sm:$0xff]
        %v931 = vld [vmem:[%s4 + $0x68] sm:$0xff]
        %v932 = vld [vmem:[%s4 + $0x70] sm:$0xff]
        %v933 = vld [vmem:[%s4 + $0x78] sm:$0xff]
        %v934 = vld [vmem:[%s4 + $0x80] sm:$0xff]
        %v935 = vld [vmem:[%s4 + $0x88] sm:$0xff]
        %v936 = vld [vmem:[%s4 + $0x90] sm:$0xff]
        %v937 = vld [vmem:[%s4 + $0x98] sm:$0xff]
        %v938 = vld [vmem:[%s4 + $0xa0] sm:$0xff]
        %v939 = vld [vmem:[%s4 + $0xa8] sm:$0xff]
        %v940 = vld [vmem:[%s4 + $0xb0] sm:$0xff]
        %v941 = vld [vmem:[%s4 + $0xb8] sm:$0xff]
        %v942 = vld [vmem:[%s4 + $0xc0] sm:$0xff]
        %v943 = vld [vmem:[%s4 + $0xc8] sm:$0xff]
        %v944 = vld [vmem:[%s4 + $0xd0] sm:$0xff]
        %v945 = vld [vmem:[%s4 + $0xd8] sm:$0xff]
        %v946 = vld [vmem:[%s4 + $0xe0] sm:$0xff]
        %v947 = vld [vmem:[%s4 + $0xe8] sm:$0xff]
        %v948 = vld [vmem:[%s4 + $0xf0] sm:$0xff]
        %v949 = vld [vmem:[%s4 + $0xf8] sm:$0xff]
        %v950 = vld [vmem:[%s4 + $0x100] sm:$0xff]
        %v951 = vld [vmem:[%s4 + $0x108] sm:$0xff]
        %v952 = vld [vmem:[%s4 + $0x110] sm:$0xff]
        %v953 = vld [vmem:[%s4 + $0x118] sm:$0xff]
        %v954 = vld [vmem:[%s4 + $0x120] sm:$0xff]
        %v955 = vld [vmem:[%s4 + $0x128] sm:$0xff]
        %v956 = vld [vmem:[%s4 + $0x130] sm:$0xff]
        %v957 = vld [vmem:[%s4 + $0x138] sm:$0xff]
        %v958 = vld [vmem:[%s4 + $0x140] sm:$0xff]
        %v959 = vld [vmem:[%s4 + $0x148] sm:$0xff]
        %v960 = vld [vmem:[%s4 + $0x150] sm:$0xff]
        %v961 = vld [vmem:[%s4 + $0x158] sm:$0xff]
        %v962 = vld [vmem:[%s4 + $0x160] sm:$0xff]
        %v963 = vld [vmem:[%s4 + $0x168] sm:$0xff]
        %v964 = vld [vmem:[%s4 + $0x170] sm:$0xff]
        %v965 = vld [vmem:[%s4 + $0x178] sm:$0xff]
        %v966 = vld [vmem:[%s4 + $0x180] sm:$0xff]
        %v967 = vld [vmem:[%s4 + $0x188] sm:$0xff]
        %v968 = vld [vmem:[%s4 + $0x190] sm:$0xff]
        %v969 = vld [vmem:[%s4 + $0x198] sm:$0xff]
        %v970 = vld [vmem:[%s4 + $0x1a0] sm:$0xff]
        %v971 = vld [vmem:[%s4 + $0x1a8] sm:$0xff]
        %v972 = vld [vmem:[%s4 + $0x1b0] sm:$0xff]
        %v973 = vld [vmem:[%s4 + $0x1b8] sm:$0xff]
        %v974 = vld [vmem:[%s4 + $0x1c0] sm:$0xff]
        %v975 = vld [vmem:[%s4 + $0x1c8] sm:$0xff]
        %v976 = vld [vmem:[%s4 + $0x1d0] sm:$0xff]
        %v977 = vld [vmem:[%s4 + $0x1d8] sm:$0xff]
        %v978 = vld [vmem:[%s4 + $0x1e0] sm:$0xff]
        %v979 = vld [vmem:[%s4 + $0x1e8] sm:$0xff]
        %v980 = vld [vmem:[%s4 + $0x1f0] sm:$0xff]
        %v981 = vld [vmem:[%s4 + $0x1f8] sm:$0xff]
        %v982 = vld [vmem:[%s5] sm:$0x3]
        %v984 = vlaneseq
        %v985 = vshrl.u32 %v984, 7
        %v986 = vsub.s32 0, %v985
        %v987 = vrot.slane %v982, %v986
        %v988 = vlaneseq
        %v989 = vshrl.u32 %v988, 7
        %v990 = vsub.s32 1, %v989
        %v991 = vrot.slane %v982, %v990
        %v1058 = vunpack.c.l.b16 %v918
        %v1059 = vunpack.c.h.b16 %v918
        %v1060 = vunpack.c.l.b16 %v919
        %v1061 = vunpack.c.h.b16 %v919
        %v1062 = vunpack.c.l.b16 %v920
        %v1063 = vunpack.c.h.b16 %v920
        %v1064 = vunpack.c.l.b16 %v921
        %v1065 = vunpack.c.h.b16 %v921
        %v1066 = vunpack.c.l.b16 %v922
        %v1067 = vunpack.c.h.b16 %v922
        %v1068 = vunpack.c.l.b16 %v923
        %v1069 = vunpack.c.h.b16 %v923
        %v1070 = vunpack.c.l.b16 %v924
        %v1071 = vunpack.c.h.b16 %v924
        %v1072 = vunpack.c.l.b16 %v925
        %v1073 = vunpack.c.h.b16 %v925
        %v1074 = vunpack.c.l.b16 %v926
        %v1075 = vunpack.c.h.b16 %v926
        %v1076 = vunpack.c.l.b16 %v927
        %v1077 = vunpack.c.h.b16 %v927
        %v1078 = vunpack.c.l.b16 %v928
        %v1079 = vunpack.c.h.b16 %v928
        %v1080 = vunpack.c.l.b16 %v929
        %v1081 = vunpack.c.h.b16 %v929
        %v1082 = vunpack.c.l.b16 %v930
        %v1083 = vunpack.c.h.b16 %v930
        %v1084 = vunpack.c.l.b16 %v931
        %v1085 = vunpack.c.h.b16 %v931
        %v1086 = vunpack.c.l.b16 %v932
        %v1087 = vunpack.c.h.b16 %v932
        %v1088 = vunpack.c.l.b16 %v933
        %v1089 = vunpack.c.h.b16 %v933
        %v1090 = vunpack.c.l.b16 %v934
        %v1091 = vunpack.c.h.b16 %v934
        %v1092 = vunpack.c.l.b16 %v935
        %v1093 = vunpack.c.h.b16 %v935
        %v1094 = vunpack.c.l.b16 %v936
        %v1095 = vunpack.c.h.b16 %v936
        %v1096 = vunpack.c.l.b16 %v937
        %v1097 = vunpack.c.h.b16 %v937
        %v1098 = vunpack.c.l.b16 %v938
        %v1099 = vunpack.c.h.b16 %v938
        %v1100 = vunpack.c.l.b16 %v939
        %v1101 = vunpack.c.h.b16 %v939
        %v1102 = vunpack.c.l.b16 %v940
        %v1103 = vunpack.c.h.b16 %v940
        %v1104 = vunpack.c.l.b16 %v941
        %v1105 = vunpack.c.h.b16 %v941
        %v1106 = vunpack.c.l.b16 %v942
        %v1107 = vunpack.c.h.b16 %v942
        %v1108 = vunpack.c.l.b16 %v943
        %v1109 = vunpack.c.h.b16 %v943
        %v1110 = vunpack.c.l.b16 %v944
        %v1111 = vunpack.c.h.b16 %v944
        %v1112 = vunpack.c.l.b16 %v945
        %v1113 = vunpack.c.h.b16 %v945
        %v1114 = vunpack.c.l.b16 %v946
        %v1115 = vunpack.c.h.b16 %v946
        %v1116 = vunpack.c.l.b16 %v947
        %v1117 = vunpack.c.h.b16 %v947
        %v1118 = vunpack.c.l.b16 %v948
        %v1119 = vunpack.c.h.b16 %v948
        %v1120 = vunpack.c.l.b16 %v949
        %v1121 = vunpack.c.h.b16 %v949
        %v1122 = vunpack.c.l.b16 %v950
        %v1123 = vunpack.c.h.b16 %v950
        %v1124 = vunpack.c.l.b16 %v951
        %v1125 = vunpack.c.h.b16 %v951
        %v1126 = vunpack.c.l.b16 %v952
        %v1127 = vunpack.c.h.b16 %v952
        %v1128 = vunpack.c.l.b16 %v953
        %v1129 = vunpack.c.h.b16 %v953
        %v1130 = vunpack.c.l.b16 %v954
        %v1131 = vunpack.c.h.b16 %v954
        %v1132 = vunpack.c.l.b16 %v955
        %v1133 = vunpack.c.h.b16 %v955
        %v1134 = vunpack.c.l.b16 %v956
        %v1135 = vunpack.c.h.b16 %v956
        %v1136 = vunpack.c.l.b16 %v957
        %v1137 = vunpack.c.h.b16 %v957
        %v1138 = vunpack.c.l.b16 %v958
        %v1139 = vunpack.c.h.b16 %v958
        %v1140 = vunpack.c.l.b16 %v959
        %v1141 = vunpack.c.h.b16 %v959
        %v1142 = vunpack.c.l.b16 %v960
        %v1143 = vunpack.c.h.b16 %v960
        %v1144 = vunpack.c.l.b16 %v961
        %v1145 = vunpack.c.h.b16 %v961
        %v1146 = vunpack.c.l.b16 %v962
        %v1147 = vunpack.c.h.b16 %v962
        %v1148 = vunpack.c.l.b16 %v963
        %v1149 = vunpack.c.h.b16 %v963
        %v1150 = vunpack.c.l.b16 %v964
        %v1151 = vunpack.c.h.b16 %v964
        %v1152 = vunpack.c.l.b16 %v965
        %v1153 = vunpack.c.h.b16 %v965
        %v1154 = vunpack.c.l.b16 %v966
        %v1155 = vunpack.c.h.b16 %v966
        %v1156 = vunpack.c.l.b16 %v967
        %v1157 = vunpack.c.h.b16 %v967
        %v1158 = vunpack.c.l.b16 %v968
        %v1159 = vunpack.c.h.b16 %v968
        %v1160 = vunpack.c.l.b16 %v969
        %v1161 = vunpack.c.h.b16 %v969
        %v1162 = vunpack.c.l.b16 %v970
        %v1163 = vunpack.c.h.b16 %v970
        %v1164 = vunpack.c.l.b16 %v971
        %v1165 = vunpack.c.h.b16 %v971
        %v1166 = vunpack.c.l.b16 %v972
        %v1167 = vunpack.c.h.b16 %v972
        %v1168 = vunpack.c.l.b16 %v973
        %v1169 = vunpack.c.h.b16 %v973
        %v1170 = vunpack.c.l.b16 %v974
        %v1171 = vunpack.c.h.b16 %v974
        %v1172 = vunpack.c.l.b16 %v975
        %v1173 = vunpack.c.h.b16 %v975
        %v1174 = vunpack.c.l.b16 %v976
        %v1175 = vunpack.c.h.b16 %v976
        %v1176 = vunpack.c.l.b16 %v977
        %v1177 = vunpack.c.h.b16 %v977
        %v1178 = vunpack.c.l.b16 %v978
        %v1179 = vunpack.c.h.b16 %v978
        %v1180 = vunpack.c.l.b16 %v979
        %v1181 = vunpack.c.h.b16 %v979
        %v1182 = vunpack.c.l.b16 %v980
        %v1183 = vunpack.c.h.b16 %v980
        %v1184 = vunpack.c.l.b16 %v981
        %v1185 = vunpack.c.h.b16 %v981
        %v1186 = vpack.c.b16 %v1060, %v1058
        %v1187 = vpack.c.b16 %v1061, %v1059
        %v1188 = vpack.c.b16 %v1064, %v1062
        %v1189 = vpack.c.b16 %v1065, %v1063
        %v1190 = vpack.c.b16 %v1068, %v1066
        %v1191 = vpack.c.b16 %v1069, %v1067
        %v1192 = vpack.c.b16 %v1072, %v1070
        %v1193 = vpack.c.b16 %v1073, %v1071
        %v1194 = vpack.c.b16 %v1076, %v1074
        %v1195 = vpack.c.b16 %v1077, %v1075
        %v1196 = vpack.c.b16 %v1080, %v1078
        %v1197 = vpack.c.b16 %v1081, %v1079
        %v1198 = vpack.c.b16 %v1084, %v1082
        %v1199 = vpack.c.b16 %v1085, %v1083
        %v1200 = vpack.c.b16 %v1088, %v1086
        %v1201 = vpack.c.b16 %v1089, %v1087
        %v1202 = vpack.c.b16 %v1092, %v1090
        %v1203 = vpack.c.b16 %v1093, %v1091
        %v1204 = vpack.c.b16 %v1096, %v1094
        %v1205 = vpack.c.b16 %v1097, %v1095
        %v1206 = vpack.c.b16 %v1100, %v1098
        %v1207 = vpack.c.b16 %v1101, %v1099
        %v1208 = vpack.c.b16 %v1104, %v1102
        %v1209 = vpack.c.b16 %v1105, %v1103
        %v1210 = vpack.c.b16 %v1108, %v1106
        %v1211 = vpack.c.b16 %v1109, %v1107
        %v1212 = vpack.c.b16 %v1112, %v1110
        %v1213 = vpack.c.b16 %v1113, %v1111
        %v1214 = vpack.c.b16 %v1116, %v1114
        %v1215 = vpack.c.b16 %v1117, %v1115
        %v1216 = vpack.c.b16 %v1120, %v1118
        %v1217 = vpack.c.b16 %v1121, %v1119
        %v1218 = vpack.c.b16 %v1124, %v1122
        %v1219 = vpack.c.b16 %v1125, %v1123
        %v1220 = vpack.c.b16 %v1128, %v1126
        %v1221 = vpack.c.b16 %v1129, %v1127
        %v1222 = vpack.c.b16 %v1132, %v1130
        %v1223 = vpack.c.b16 %v1133, %v1131
        %v1224 = vpack.c.b16 %v1136, %v1134
        %v1225 = vpack.c.b16 %v1137, %v1135
        %v1226 = vpack.c.b16 %v1140, %v1138
        %v1227 = vpack.c.b16 %v1141, %v1139
        %v1228 = vpack.c.b16 %v1144, %v1142
        %v1229 = vpack.c.b16 %v1145, %v1143
        %v1230 = vpack.c.b16 %v1148, %v1146
        %v1231 = vpack.c.b16 %v1149, %v1147
        %v1232 = vpack.c.b16 %v1152, %v1150
        %v1233 = vpack.c.b16 %v1153, %v1151
        %v1234 = vpack.c.b16 %v1156, %v1154
        %v1235 = vpack.c.b16 %v1157, %v1155
        %v1236 = vpack.c.b16 %v1160, %v1158
        %v1237 = vpack.c.b16 %v1161, %v1159
        %v1238 = vpack.c.b16 %v1164, %v1162
        %v1239 = vpack.c.b16 %v1165, %v1163
        %v1240 = vpack.c.b16 %v1168, %v1166
        %v1241 = vpack.c.b16 %v1169, %v1167
        %v1242 = vpack.c.b16 %v1172, %v1170
        %v1243 = vpack.c.b16 %v1173, %v1171
        %v1244 = vpack.c.b16 %v1176, %v1174
        %v1245 = vpack.c.b16 %v1177, %v1175
        %v1246 = vpack.c.b16 %v1180, %v1178
        %v1247 = vpack.c.b16 %v1181, %v1179
        %v1248 = vpack.c.b16 %v1184, %v1182
        %v1249 = vpack.c.b16 %v1185, %v1183
        %1314 = vmatprep.subr.bf16.mxu0 %v1201
        %1315 = vmatpush1.bf16.msra.mxu0 %v1200
        %1316 = vmatprep.subr.bf16.mxu0 %v1199
        %1317 = vmatpush1.bf16.msra.mxu0 %v1198
        %1318 = vmatprep.subr.bf16.mxu0 %v1197
        %1319 = vmatpush1.bf16.msra.mxu0 %v1196
        %1320 = vmatprep.subr.bf16.mxu0 %v1195
        %1321 = vmatpush1.bf16.msra.mxu0 %v1194
        %1322 = vmatprep.subr.bf16.mxu0 %v1193
        %1323 = vmatpush1.bf16.msra.mxu0 %v1192
        %1324 = vmatprep.subr.bf16.mxu0 %v1191
        %1325 = vmatpush1.bf16.msra.mxu0 %v1190
        %1326 = vmatprep.subr.bf16.mxu0 %v1189
        %1327 = vmatpush1.bf16.msra.mxu0 %v1188
        %1328 = vmatprep.subr.bf16.mxu0 %v1187
        %1329 = vmatpush1.bf16.msra.mxu0 %v1186
        %1330 = vmatprep.subr.bf16.mxu0 %v1217
        %1331 = vmatpush2.bf16.msra.mxu0 %v1216
        %1332 = vmatprep.subr.bf16.mxu0 %v1215
        %1333 = vmatpush2.bf16.msra.mxu0 %v1214
        %1334 = vmatprep.subr.bf16.mxu0 %v1213
        %1335 = vmatpush2.bf16.msra.mxu0 %v1212
        %1336 = vmatprep.subr.bf16.mxu0 %v1211
        %1337 = vmatpush2.bf16.msra.mxu0 %v1210
        %1338 = vmatprep.subr.bf16.mxu0 %v1209
        %1339 = vmatpush2.bf16.msra.mxu0 %v1208
        %1340 = vmatprep.subr.bf16.mxu0 %v1207
        %1341 = vmatpush2.bf16.msra.mxu0 %v1206
        %1342 = vmatprep.subr.bf16.mxu0 %v1205
        %1343 = vmatpush2.bf16.msra.mxu0 %v1204
        %1344 = vmatprep.subr.bf16.mxu0 %v1203
        %1345 = vmatpush2.bf16.msra.mxu0 %v1202
        %1346 = vmatprep.mubr.bf16.mxu0 %v911
        %1347 = vmatmul.mubr.bf16.gmra.mxu0 %v910
        %v1348 = vpop.f32.mrf.mxu0
        %v1349 = vadd.f32 %v987, %v1348
        %v1350 = vpop.f32.mrf.mxu0
        %v1351 = vadd.f32 %v991, %v1350
        %v1352 = vpop.f32.mrf.mxu0
        %v1353 = vadd.f32 %v987, %v1352
        %v1354 = vpop.f32.mrf.mxu0
        %v1355 = vadd.f32 %v991, %v1354
        %1356 = vmatprep.mubr.bf16.mxu0 %v915
        %1357 = vmatmul.mubr.bf16.gmra.mxu0 %v914
        %v1358 = vpop.f32.mrf.mxu0
        %v1359 = vadd.f32 %v987, %v1358
        %v1360 = vpop.f32.mrf.mxu0
        %v1361 = vadd.f32 %v991, %v1360
        %v1362 = vpop.f32.mrf.mxu0
        %v1363 = vadd.f32 %v987, %v1362
        %v1364 = vpop.f32.mrf.mxu0
        %v1365 = vadd.f32 %v991, %v1364
        %1366 = vdwg.mxu0
        %1367 = vmatprep.subr.bf16.mxu0 %v1233
        %1368 = vmatpush1.bf16.msra.mxu0 %v1232
        %1369 = vmatprep.subr.bf16.mxu0 %v1231
        %1370 = vmatpush1.bf16.msra.mxu0 %v1230
        %1371 = vmatprep.subr.bf16.mxu0 %v1229
        %1372 = vmatpush1.bf16.msra.mxu0 %v1228
        %1373 = vmatprep.subr.bf16.mxu0 %v1227
        %1374 = vmatpush1.bf16.msra.mxu0 %v1226
        %1375 = vmatprep.subr.bf16.mxu0 %v1225
        %1376 = vmatpush1.bf16.msra.mxu0 %v1224
        %1377 = vmatprep.subr.bf16.mxu0 %v1223
        %1378 = vmatpush1.bf16.msra.mxu0 %v1222
        %1379 = vmatprep.subr.bf16.mxu0 %v1221
        %1380 = vmatpush1.bf16.msra.mxu0 %v1220
        %1381 = vmatprep.subr.bf16.mxu0 %v1219
        %1382 = vmatpush1.bf16.msra.mxu0 %v1218
        %1383 = vmatprep.subr.bf16.mxu0 %v1249
        %1384 = vmatpush2.bf16.msra.mxu0 %v1248
        %1385 = vmatprep.subr.bf16.mxu0 %v1247
        %1386 = vmatpush2.bf16.msra.mxu0 %v1246
        %1387 = vmatprep.subr.bf16.mxu0 %v1245
        %1388 = vmatpush2.bf16.msra.mxu0 %v1244
        %1389 = vmatprep.subr.bf16.mxu0 %v1243
        %1390 = vmatpush2.bf16.msra.mxu0 %v1242
        %1391 = vmatprep.subr.bf16.mxu0 %v1241
        %1392 = vmatpush2.bf16.msra.mxu0 %v1240
        %1393 = vmatprep.subr.bf16.mxu0 %v1239
        %1394 = vmatpush2.bf16.msra.mxu0 %v1238
        %1395 = vmatprep.subr.bf16.mxu0 %v1237
        %1396 = vmatpush2.bf16.msra.mxu0 %v1236
        %1397 = vmatprep.subr.bf16.mxu0 %v1235
        %1398 = vmatpush2.bf16.msra.mxu0 %v1234
        %1399 = vmatprep.mubr.bf16.mxu0 %v913
        %1400 = vmatmul.mubr.bf16.gmra.mxu0 %v912
        %v1401 = vpop.f32.mrf.mxu0
        %v1402 = vadd.f32 %v1349, %v1401
        %v1403 = vpop.f32.mrf.mxu0
        %v1404 = vadd.f32 %v1351, %v1403
        %v1405 = vpop.f32.mrf.mxu0
        %v1406 = vadd.f32 %v1353, %v1405
        %v1407 = vpop.f32.mrf.mxu0
        %v1408 = vadd.f32 %v1355, %v1407
        %1409 = vmatprep.mubr.bf16.mxu0 %v917
        %1410 = vmatmul.mubr.bf16.gmra.mxu0 %v916
        %v1411 = vpop.f32.mrf.mxu0
        %v1412 = vadd.f32 %v1359, %v1411
        %v1413 = vpop.f32.mrf.mxu0
        %v1414 = vadd.f32 %v1361, %v1413
        %v1415 = vpop.f32.mrf.mxu0
        %v1416 = vadd.f32 %v1363, %v1415
        %v1417 = vpop.f32.mrf.mxu0
        %v1418 = vadd.f32 %v1365, %v1417
        %1419 = vdwg.mxu0
        %v1420 = vmax.f32 %v1402, 0.0
        %v1421 = vmax.f32 %v1404, 0.0
        %v1422 = vmax.f32 %v1406, 0.0
        %v1423 = vmax.f32 %v1408, 0.0
        %v1424 = vmax.f32 %v1412, 0.0
        %v1425 = vmax.f32 %v1414, 0.0
        %v1426 = vmax.f32 %v1416, 0.0
        %v1427 = vmax.f32 %v1418, 0.0
        %v1428 = vpack.c.bf16 %v1422, %v1420
        %v1429 = vpack.c.bf16 %v1423, %v1421
        %v1430 = vpack.c.bf16 %v1426, %v1424
        %v1431 = vpack.c.bf16 %v1427, %v1425
        %v1432 = vld [vmem:[%s6] sm:$0xf]
        %v1433 = vld [vmem:[%s6 + $0x4] sm:$0xf]
        %v1434 = vld [vmem:[%s6 + $0x8] sm:$0xf]
        %v1435 = vld [vmem:[%s6 + $0xc] sm:$0xf]
        %v1436 = vld [vmem:[%s6 + $0x10] sm:$0xf]
        %v1437 = vld [vmem:[%s6 + $0x14] sm:$0xf]
        %v1438 = vld [vmem:[%s6 + $0x18] sm:$0xf]
        %v1439 = vld [vmem:[%s6 + $0x1c] sm:$0xf]
        %v1440 = vld [vmem:[%s6 + $0x20] sm:$0xf]
        %v1441 = vld [vmem:[%s6 + $0x24] sm:$0xf]
        %v1442 = vld [vmem:[%s6 + $0x28] sm:$0xf]
        %v1443 = vld [vmem:[%s6 + $0x2c] sm:$0xf]
        %v1444 = vld [vmem:[%s6 + $0x30] sm:$0xf]
        %v1445 = vld [vmem:[%s6 + $0x34] sm:$0xf]
        %v1446 = vld [vmem:[%s6 + $0x38] sm:$0xf]
        %v1447 = vld [vmem:[%s6 + $0x3c] sm:$0xf]
        %v1448 = vld [vmem:[%s6 + $0x40] sm:$0xf]
        %v1449 = vld [vmem:[%s6 + $0x44] sm:$0xf]
        %v1450 = vld [vmem:[%s6 + $0x48] sm:$0xf]
        %v1451 = vld [vmem:[%s6 + $0x4c] sm:$0xf]
        %v1452 = vld [vmem:[%s6 + $0x50] sm:$0xf]
        %v1453 = vld [vmem:[%s6 + $0x54] sm:$0xf]
        %v1454 = vld [vmem:[%s6 + $0x58] sm:$0xf]
        %v1455 = vld [vmem:[%s6 + $0x5c] sm:$0xf]
        %v1456 = vld [vmem:[%s6 + $0x60] sm:$0xf]
        %v1457 = vld [vmem:[%s6 + $0x64] sm:$0xf]
        %v1458 = vld [vmem:[%s6 + $0x68] sm:$0xf]
        %v1459 = vld [vmem:[%s6 + $0x6c] sm:$0xf]
        %v1460 = vld [vmem:[%s6 + $0x70] sm:$0xf]
        %v1461 = vld [vmem:[%s6 + $0x74] sm:$0xf]
        %v1462 = vld [vmem:[%s6 + $0x78] sm:$0xf]
        %v1463 = vld [vmem:[%s6 + $0x7c] sm:$0xf]
        %v1464 = vld [vmem:[%s7] sm:$0x1]
        %v1466 = vlaneseq
        %v1467 = vshrl.u32 %v1466, 7
        %v1468 = vsub.s32 0, %v1467
        %v1469 = vrot.slane %v1464, %v1468
        %v1503 = vunpack.c.l.b16 %v1432
        %v1504 = vunpack.c.l.b16 %v1433
        %v1505 = vunpack.c.l.b16 %v1434
        %v1506 = vunpack.c.l.b16 %v1435
        %v1507 = vunpack.c.l.b16 %v1436
        %v1508 = vunpack.c.l.b16 %v1437
        %v1509 = vunpack.c.l.b16 %v1438
        %v1510 = vunpack.c.l.b16 %v1439
        %v1511 = vunpack.c.l.b16 %v1440
        %v1512 = vunpack.c.l.b16 %v1441
        %v1513 = vunpack.c.l.b16 %v1442
        %v1514 = vunpack.c.l.b16 %v1443
        %v1515 = vunpack.c.l.b16 %v1444
        %v1516 = vunpack.c.l.b16 %v1445
        %v1517 = vunpack.c.l.b16 %v1446
        %v1518 = vunpack.c.l.b16 %v1447
        %v1519 = vunpack.c.l.b16 %v1448
        %v1520 = vunpack.c.l.b16 %v1449
        %v1521 = vunpack.c.l.b16 %v1450
        %v1522 = vunpack.c.l.b16 %v1451
        %v1523 = vunpack.c.l.b16 %v1452
        %v1524 = vunpack.c.l.b16 %v1453
        %v1525 = vunpack.c.l.b16 %v1454
        %v1526 = vunpack.c.l.b16 %v1455
        %v1527 = vunpack.c.l.b16 %v1456
        %v1528 = vunpack.c.l.b16 %v1457
        %v1529 = vunpack.c.l.b16 %v1458
        %v1530 = vunpack.c.l.b16 %v1459
        %v1531 = vunpack.c.l.b16 %v1460
        %v1532 = vunpack.c.l.b16 %v1461
        %v1533 = vunpack.c.l.b16 %v1462
        %v1534 = vunpack.c.l.b16 %v1463
        %v1535 = vpack.c.b16 %v1504, %v1503
        %v1536 = vpack.c.b16 %v1506, %v1505
        %v1537 = vpack.c.b16 %v1508, %v1507
        %v1538 = vpack.c.b16 %v1510, %v1509
        %v1539 = vpack.c.b16 %v1512, %v1511
        %v1540 = vpack.c.b16 %v1514, %v1513
        %v1541 = vpack.c.b16 %v1516, %v1515
        %v1542 = vpack.c.b16 %v1518, %v1517
        %v1543 = vpack.c.b16 %v1520, %v1519
        %v1544 = vpack.c.b16 %v1522, %v1521
        %v1545 = vpack.c.b16 %v1524, %v1523
        %v1546 = vpack.c.b16 %v1526, %v1525
        %v1547 = vpack.c.b16 %v1528, %v1527
        %v1548 = vpack.c.b16 %v1530, %v1529
        %v1549 = vpack.c.b16 %v1532, %v1531
        %v1550 = vpack.c.b16 %v1534, %v1533
        %1567 = vmatprep.subr.bf16.mxu0 0
        %1568 = vmatpush1.bf16.msra.mxu0 %v1542
        %1569 = vmatprep.subr.bf16.mxu0 0
        %1570 = vmatpush1.bf16.msra.mxu0 %v1541
        %1571 = vmatprep.subr.bf16.mxu0 0
        %1572 = vmatpush1.bf16.msra.mxu0 %v1540
        %1573 = vmatprep.subr.bf16.mxu0 0
        %1574 = vmatpush1.bf16.msra.mxu0 %v1539
        %1575 = vmatprep.subr.bf16.mxu0 0
        %1576 = vmatpush1.bf16.msra.mxu0 %v1538
        %1577 = vmatprep.subr.bf16.mxu0 0
        %1578 = vmatpush1.bf16.msra.mxu0 %v1537
        %1579 = vmatprep.subr.bf16.mxu0 0
        %1580 = vmatpush1.bf16.msra.mxu0 %v1536
        %1581 = vmatprep.subr.bf16.mxu0 0
        %1582 = vmatpush1.bf16.msra.mxu0 %v1535
        %1583 = vmatprep.subr.bf16.mxu0 0
        %1584 = vmatpush2.bf16.msra.mxu0 %v1550
        %1585 = vmatprep.subr.bf16.mxu0 0
        %1586 = vmatpush2.bf16.msra.mxu0 %v1549
        %1587 = vmatprep.subr.bf16.mxu0 0
        %1588 = vmatpush2.bf16.msra.mxu0 %v1548
        %1589 = vmatprep.subr.bf16.mxu0 0
        %1590 = vmatpush2.bf16.msra.mxu0 %v1547
        %1591 = vmatprep.subr.bf16.mxu0 0
        %1592 = vmatpush2.bf16.msra.mxu0 %v1546
        %1593 = vmatprep.subr.bf16.mxu0 0
        %1594 = vmatpush2.bf16.msra.mxu0 %v1545
        %1595 = vmatprep.subr.bf16.mxu0 0
        %1596 = vmatpush2.bf16.msra.mxu0 %v1544
        %1597 = vmatprep.subr.bf16.mxu0 0
        %1598 = vmatpush2.bf16.msra.mxu0 %v1543
        %1599 = vmatprep.mubr.bf16.mxu0 %v1429
        %1600 = vmatmul.mubr.bf16.gmra.mxu0 %v1428
        %v1601 = vpop.f32.mrf.mxu0
        %v1602 = vadd.f32 %v1469, %v1601
        %v1603 = vpop.f32.mrf.mxu0
        %v1604 = vpop.f32.mrf.mxu0
        %v1605 = vadd.f32 %v1469, %v1604
        %v1606 = vpop.f32.mrf.mxu0
        %1607 = vmatprep.mubr.bf16.mxu0 %v1431
        %1608 = vmatmul.mubr.bf16.gmra.mxu0 %v1430
        %v1609 = vpop.f32.mrf.mxu0
        %v1610 = vadd.f32 %v1469, %v1609
        %v1611 = vpop.f32.mrf.mxu0
        %v1612 = vpop.f32.mrf.mxu0
        %v1613 = vadd.f32 %v1469, %v1612
        %v1614 = vpop.f32.mrf.mxu0
        %1615 = vdwg.mxu0
        %v1616 = vld [vmem:[%s8] sm:$0xf]
        %v1617 = vld [vmem:[%s8 + $0x4] sm:$0xf]
        %v1618 = vld [vmem:[%s8 + $0x8] sm:$0xf]
        %v1619 = vld [vmem:[%s8 + $0xc] sm:$0xf]
        %v1620 = vld [vmem:[%s8 + $0x10] sm:$0xf]
        %v1621 = vld [vmem:[%s8 + $0x14] sm:$0xf]
        %v1622 = vld [vmem:[%s8 + $0x18] sm:$0xf]
        %v1623 = vld [vmem:[%s8 + $0x1c] sm:$0xf]
        %v1624 = vld [vmem:[%s8 + $0x20] sm:$0xf]
        %v1625 = vld [vmem:[%s8 + $0x24] sm:$0xf]
        %v1626 = vld [vmem:[%s8 + $0x28] sm:$0xf]
        %v1627 = vld [vmem:[%s8 + $0x2c] sm:$0xf]
        %v1628 = vld [vmem:[%s8 + $0x30] sm:$0xf]
        %v1629 = vld [vmem:[%s8 + $0x34] sm:$0xf]
        %v1630 = vld [vmem:[%s8 + $0x38] sm:$0xf]
        %v1631 = vld [vmem:[%s8 + $0x3c] sm:$0xf]
        %v1632 = vld [vmem:[%s8 + $0x40] sm:$0xf]
        %v1633 = vld [vmem:[%s8 + $0x44] sm:$0xf]
        %v1634 = vld [vmem:[%s8 + $0x48] sm:$0xf]
        %v1635 = vld [vmem:[%s8 + $0x4c] sm:$0xf]
        %v1636 = vld [vmem:[%s8 + $0x50] sm:$0xf]
        %v1637 = vld [vmem:[%s8 + $0x54] sm:$0xf]
        %v1638 = vld [vmem:[%s8 + $0x58] sm:$0xf]
        %v1639 = vld [vmem:[%s8 + $0x5c] sm:$0xf]
        %v1640 = vld [vmem:[%s8 + $0x60] sm:$0xf]
        %v1641 = vld [vmem:[%s8 + $0x64] sm:$0xf]
        %v1642 = vld [vmem:[%s8 + $0x68] sm:$0xf]
        %v1643 = vld [vmem:[%s8 + $0x6c] sm:$0xf]
        %v1644 = vld [vmem:[%s8 + $0x70] sm:$0xf]
        %v1645 = vld [vmem:[%s8 + $0x74] sm:$0xf]
        %v1646 = vld [vmem:[%s8 + $0x78] sm:$0xf]
        %v1647 = vld [vmem:[%s8 + $0x7c] sm:$0xf]
        %v1648 = vld [vmem:[%s9] sm:$0x1]
        %v1650 = vlaneseq
        %v1651 = vshrl.u32 %v1650, 7
        %v1652 = vsub.s32 0, %v1651
        %v1653 = vrot.slane %v1648, %v1652
        %v1687 = vunpack.c.l.b16 %v1616
        %v1688 = vunpack.c.l.b16 %v1617
        %v1689 = vunpack.c.l.b16 %v1618
        %v1690 = vunpack.c.l.b16 %v1619
        %v1691 = vunpack.c.l.b16 %v1620
        %v1692 = vunpack.c.l.b16 %v1621
        %v1693 = vunpack.c.l.b16 %v1622
        %v1694 = vunpack.c.l.b16 %v1623
        %v1695 = vunpack.c.l.b16 %v1624
        %v1696 = vunpack.c.l.b16 %v1625
        %v1697 = vunpack.c.l.b16 %v1626
        %v1698 = vunpack.c.l.b16 %v1627
        %v1699 = vunpack.c.l.b16 %v1628
        %v1700 = vunpack.c.l.b16 %v1629
        %v1701 = vunpack.c.l.b16 %v1630
        %v1702 = vunpack.c.l.b16 %v1631
        %v1703 = vunpack.c.l.b16 %v1632
        %v1704 = vunpack.c.l.b16 %v1633
        %v1705 = vunpack.c.l.b16 %v1634
        %v1706 = vunpack.c.l.b16 %v1635
        %v1707 = vunpack.c.l.b16 %v1636
        %v1708 = vunpack.c.l.b16 %v1637
        %v1709 = vunpack.c.l.b16 %v1638
        %v1710 = vunpack.c.l.b16 %v1639
        %v1711 = vunpack.c.l.b16 %v1640
        %v1712 = vunpack.c.l.b16 %v1641
        %v1713 = vunpack.c.l.b16 %v1642
        %v1714 = vunpack.c.l.b16 %v1643
        %v1715 = vunpack.c.l.b16 %v1644
        %v1716 = vunpack.c.l.b16 %v1645
        %v1717 = vunpack.c.l.b16 %v1646
        %v1718 = vunpack.c.l.b16 %v1647
        %v1719 = vpack.c.b16 %v1688, %v1687
        %v1720 = vpack.c.b16 %v1690, %v1689
        %v1721 = vpack.c.b16 %v1692, %v1691
        %v1722 = vpack.c.b16 %v1694, %v1693
        %v1723 = vpack.c.b16 %v1696, %v1695
        %v1724 = vpack.c.b16 %v1698, %v1697
        %v1725 = vpack.c.b16 %v1700, %v1699
        %v1726 = vpack.c.b16 %v1702, %v1701
        %v1727 = vpack.c.b16 %v1704, %v1703
        %v1728 = vpack.c.b16 %v1706, %v1705
        %v1729 = vpack.c.b16 %v1708, %v1707
        %v1730 = vpack.c.b16 %v1710, %v1709
        %v1731 = vpack.c.b16 %v1712, %v1711
        %v1732 = vpack.c.b16 %v1714, %v1713
        %v1733 = vpack.c.b16 %v1716, %v1715
        %v1734 = vpack.c.b16 %v1718, %v1717
        %1751 = vmatprep.subr.bf16.mxu0 0
        %1752 = vmatpush1.bf16.msra.mxu0 %v1726
        %1753 = vmatprep.subr.bf16.mxu0 0
        %1754 = vmatpush1.bf16.msra.mxu0 %v1725
        %1755 = vmatprep.subr.bf16.mxu0 0
        %1756 = vmatpush1.bf16.msra.mxu0 %v1724
        %1757 = vmatprep.subr.bf16.mxu0 0
        %1758 = vmatpush1.bf16.msra.mxu0 %v1723
        %1759 = vmatprep.subr.bf16.mxu0 0
        %1760 = vmatpush1.bf16.msra.mxu0 %v1722
        %1761 = vmatprep.subr.bf16.mxu0 0
        %1762 = vmatpush1.bf16.msra.mxu0 %v1721
        %1763 = vmatprep.subr.bf16.mxu0 0
        %1764 = vmatpush1.bf16.msra.mxu0 %v1720
        %1765 = vmatprep.subr.bf16.mxu0 0
        %1766 = vmatpush1.bf16.msra.mxu0 %v1719
        %1767 = vmatprep.subr.bf16.mxu0 0
        %1768 = vmatpush2.bf16.msra.mxu0 %v1734
        %1769 = vmatprep.subr.bf16.mxu0 0
        %1770 = vmatpush2.bf16.msra.mxu0 %v1733
        %1771 = vmatprep.subr.bf16.mxu0 0
        %1772 = vmatpush2.bf16.msra.mxu0 %v1732
        %1773 = vmatprep.subr.bf16.mxu0 0
        %1774 = vmatpush2.bf16.msra.mxu0 %v1731
        %1775 = vmatprep.subr.bf16.mxu0 0
        %1776 = vmatpush2.bf16.msra.mxu0 %v1730
        %1777 = vmatprep.subr.bf16.mxu0 0
        %1778 = vmatpush2.bf16.msra.mxu0 %v1729
        %1779 = vmatprep.subr.bf16.mxu0 0
        %1780 = vmatpush2.bf16.msra.mxu0 %v1728
        %1781 = vmatprep.subr.bf16.mxu0 0
        %1782 = vmatpush2.bf16.msra.mxu0 %v1727
        %1783 = vmatprep.mubr.bf16.mxu0 %v1429
        %1784 = vmatmul.mubr.bf16.gmra.mxu0 %v1428
        %v1785 = vpop.f32.mrf.mxu0
        %v1786 = vadd.f32 %v1653, %v1785
        %v1787 = vpop.f32.mrf.mxu0
        %v1788 = vpop.f32.mrf.mxu0
        %v1789 = vadd.f32 %v1653, %v1788
        %v1790 = vpop.f32.mrf.mxu0
        %1791 = vmatprep.mubr.bf16.mxu0 %v1431
        %1792 = vmatmul.mubr.bf16.gmra.mxu0 %v1430
        %v1793 = vpop.f32.mrf.mxu0
        %v1794 = vadd.f32 %v1653, %v1793
        %v1795 = vpop.f32.mrf.mxu0
        %v1796 = vpop.f32.mrf.mxu0
        %v1797 = vadd.f32 %v1653, %v1796
        %v1798 = vpop.f32.mrf.mxu0
        %1799 = vdwg.mxu0
        %v1800 = vmax.f32 %v1786, -10.0
        %v1801 = vmax.f32 %v1789, -10.0
        %v1802 = vmax.f32 %v1794, -10.0
        %v1803 = vmax.f32 %v1797, -10.0
        %v1804 = vmin.f32 %v1800, 10.0
        %v1805 = vmin.f32 %v1801, 10.0
        %v1806 = vmin.f32 %v1802, 10.0
        %v1807 = vmin.f32 %v1803, 10.0
        %v1808 = vmul.f32 %v1804, 0.5
        %v1809 = vmul.f32 %v1805, 0.5
        %v1810 = vmul.f32 %v1806, 0.5
        %v1811 = vmul.f32 %v1807, 0.5
        %v1812 = vmul.f32 %v1808, 1.442695
        %v1813 = vpow.pop %v1812
        %v1814 = vmul.f32 %v1809, 1.442695
        %v1815 = vpow.pop %v1814
        %v1816 = vmul.f32 %v1810, 1.442695
        %v1817 = vpow.pop %v1816
        %v1818 = vmul.f32 %v1811, 1.442695
        %v1819 = vpow.pop %v1818
        %v1820 = vadd.f32 %v1813, 1e-06
        %v1821 = vadd.f32 %v1815, 1e-06
        %v1822 = vadd.f32 %v1817, 1e-06
        %v1823 = vadd.f32 %v1819, 1e-06
        %v1824 = vld [vmem:[%s641] sm:$0xff]
        %v1825 = vld [vmem:[%s641 + $0x8] sm:$0xff]
        %v1826 = vld [vmem:[%s641 + $0x10] sm:$0xff]
        %v1827 = vld [vmem:[%s641 + $0x18] sm:$0xff]
        %v1828 = vmul.f32 %v1824, %v1820
        %v1829 = vmul.f32 %v1825, %v1821
        %v1830 = vmul.f32 %v1826, %v1822
        %v1831 = vmul.f32 %v1827, %v1823
        %v1832 = vadd.f32 %v1602, %v1828
        %v1833 = vadd.f32 %v1605, %v1829
        %v1834 = vadd.f32 %v1610, %v1830
        %v1835 = vadd.f32 %v1613, %v1831
        %v1836 = vpack.c.bf16 %v1833, %v1832
        %v1837 = vpack.c.bf16 %v1835, %v1834
        %v1838 = vld [vmem:[%s10] sm:$0xff]
        %v1839 = vld [vmem:[%s10 + $0x8] sm:$0xff]
        %v1840 = vld [vmem:[%s11] sm:$0x3]
        %v1842 = vlaneseq
        %v1843 = vshrl.u32 %v1842, 7
        %v1844 = vsub.s32 0, %v1843
        %v1845 = vrot.slane %v1840, %v1844
        %v1846 = vlaneseq
        %v1847 = vshrl.u32 %v1846, 7
        %v1848 = vsub.s32 1, %v1847
        %v1849 = vrot.slane %v1840, %v1848
        %v1854 = vunpack.c.l.b16 %v1838
        %v1855 = vunpack.c.h.b16 %v1838
        %v1856 = vunpack.c.l.b16 %v1839
        %v1857 = vunpack.c.h.b16 %v1839
        %v1858 = vpack.c.b16 %v1856, %v1854
        %v1859 = vpack.c.b16 %v1857, %v1855
        %vm1862 = vcmask 130048
        %v1864 = vsel %vm1862, %v1836, 0
        %v1867 = vsel %vm1862, %v1837, 0
        %1869 = vmatprep.subr.bf16.mxu0 0
        %1870 = vmatpush1.bf16.msra.mxu0 0
        %1871 = vmatprep.subr.bf16.mxu0 0
        %1872 = vmatpush1.bf16.msra.mxu0 0
        %1873 = vmatprep.subr.bf16.mxu0 0
        %1874 = vmatpush1.bf16.msra.mxu0 0
        %1875 = vmatprep.subr.bf16.mxu0 0
        %1876 = vmatpush1.bf16.msra.mxu0 0
        %1877 = vmatprep.subr.bf16.mxu0 0
        %1878 = vmatpush1.bf16.msra.mxu0 0
        %1879 = vmatprep.subr.bf16.mxu0 0
        %1880 = vmatpush1.bf16.msra.mxu0 0
        %1881 = vmatprep.subr.bf16.mxu0 0
        %1882 = vmatpush1.bf16.msra.mxu0 0
        %1883 = vmatprep.subr.bf16.mxu0 %v1859
        %1884 = vmatpush1.bf16.msra.mxu0 %v1858
        %1885 = vmatprep.subr.bf16.mxu0 0
        %1886 = vmatpush2.bf16.msra.mxu0 0
        %1887 = vmatprep.subr.bf16.mxu0 0
        %1888 = vmatpush2.bf16.msra.mxu0 0
        %1889 = vmatprep.subr.bf16.mxu0 0
        %1890 = vmatpush2.bf16.msra.mxu0 0
        %1891 = vmatprep.subr.bf16.mxu0 0
        %1892 = vmatpush2.bf16.msra.mxu0 0
        %1893 = vmatprep.subr.bf16.mxu0 0
        %1894 = vmatpush2.bf16.msra.mxu0 0
        %1895 = vmatprep.subr.bf16.mxu0 0
        %1896 = vmatpush2.bf16.msra.mxu0 0
        %1897 = vmatprep.subr.bf16.mxu0 0
        %1898 = vmatpush2.bf16.msra.mxu0 0
        %1899 = vmatprep.subr.bf16.mxu0 0
        %1900 = vmatpush2.bf16.msra.mxu0 0
        %1901 = vmatprep.mubr.bf16.mxu0 0
        %1902 = vmatmul.mubr.bf16.gmra.mxu0 %v1864
        %v1903 = vpop.f32.mrf.mxu0
        %v1904 = vadd.f32 %v1845, %v1903
        %v1905 = vpop.f32.mrf.mxu0
        %v1906 = vadd.f32 %v1849, %v1905
        %v1907 = vpop.f32.mrf.mxu0
        %v1908 = vadd.f32 %v1845, %v1907
        %v1909 = vpop.f32.mrf.mxu0
        %v1910 = vadd.f32 %v1849, %v1909
        %1911 = vmatprep.mubr.bf16.mxu0 0
        %1912 = vmatmul.mubr.bf16.gmra.mxu0 %v1867
        %v1913 = vpop.f32.mrf.mxu0
        %v1914 = vadd.f32 %v1845, %v1913
        %v1915 = vpop.f32.mrf.mxu0
        %v1916 = vadd.f32 %v1849, %v1915
        %v1917 = vpop.f32.mrf.mxu0
        %v1918 = vadd.f32 %v1845, %v1917
        %v1919 = vpop.f32.mrf.mxu0
        %v1920 = vadd.f32 %v1849, %v1919
        %1921 = vdwg.mxu0
        %v1922 = vmax.f32 %v1904, 0.0
        %v1923 = vmax.f32 %v1906, 0.0
        %v1924 = vmax.f32 %v1908, 0.0
        %v1925 = vmax.f32 %v1910, 0.0
        %v1926 = vmax.f32 %v1914, 0.0
        %v1927 = vmax.f32 %v1916, 0.0
        %v1928 = vmax.f32 %v1918, 0.0
        %v1929 = vmax.f32 %v1920, 0.0
        %v1930 = vpack.c.bf16 %v1924, %v1922
        %v1931 = vpack.c.bf16 %v1925, %v1923
        %v1932 = vpack.c.bf16 %v1928, %v1926
        %v1933 = vpack.c.bf16 %v1929, %v1927
        %v1934 = vld [vmem:[#allocation5] sm:$0xff]
        %v1935 = vld [vmem:[#allocation5 + $0x8] sm:$0xff]
        %v1936 = vld [vmem:[#allocation5 + $0x10] sm:$0xff]
        %v1937 = vld [vmem:[#allocation5 + $0x18] sm:$0xff]
        %v1938 = vld [vmem:[#allocation5 + $0x20] sm:$0xff]
        %v1939 = vld [vmem:[#allocation5 + $0x28] sm:$0xff]
        %v1940 = vld [vmem:[#allocation5 + $0x30] sm:$0xff]
        %v1941 = vld [vmem:[#allocation5 + $0x38] sm:$0xff]
        %v1942 = vld [vmem:[#allocation5 + $0x40] sm:$0xff]
        %v1943 = vld [vmem:[#allocation5 + $0x48] sm:$0xff]
        %v1944 = vld [vmem:[#allocation5 + $0x50] sm:$0xff]
        %v1945 = vld [vmem:[#allocation5 + $0x58] sm:$0xff]
        %v1946 = vld [vmem:[#allocation5 + $0x60] sm:$0xff]
        %v1947 = vld [vmem:[#allocation5 + $0x68] sm:$0xff]
        %v1948 = vld [vmem:[#allocation5 + $0x70] sm:$0xff]
        %v1949 = vld [vmem:[#allocation5 + $0x78] sm:$0xff]
        %v1950 = vld [vmem:[#allocation5 + $0x80] sm:$0xff]
        %v1951 = vld [vmem:[#allocation5 + $0x88] sm:$0xff]
        %v1952 = vld [vmem:[#allocation5 + $0x90] sm:$0xff]
        %v1953 = vld [vmem:[#allocation5 + $0x98] sm:$0xff]
        %v1954 = vld [vmem:[#allocation5 + $0xa0] sm:$0xff]
        %v1955 = vld [vmem:[#allocation5 + $0xa8] sm:$0xff]
        %v1956 = vld [vmem:[#allocation5 + $0xb0] sm:$0xff]
        %v1957 = vld [vmem:[#allocation5 + $0xb8] sm:$0xff]
        %v1958 = vld [vmem:[#allocation5 + $0xc0] sm:$0xff]
        %v1959 = vld [vmem:[#allocation5 + $0xc8] sm:$0xff]
        %v1960 = vld [vmem:[#allocation5 + $0xd0] sm:$0xff]
        %v1961 = vld [vmem:[#allocation5 + $0xd8] sm:$0xff]
        %v1962 = vld [vmem:[#allocation5 + $0xe0] sm:$0xff]
        %v1963 = vld [vmem:[#allocation5 + $0xe8] sm:$0xff]
        %v1964 = vld [vmem:[#allocation5 + $0xf0] sm:$0xff]
        %v1965 = vld [vmem:[#allocation5 + $0xf8] sm:$0xff]
        %v1966 = vld [vmem:[#allocation5 + $0x100] sm:$0xff]
        %v1967 = vld [vmem:[#allocation5 + $0x108] sm:$0xff]
        %v1968 = vld [vmem:[#allocation5 + $0x110] sm:$0xff]
        %v1969 = vld [vmem:[#allocation5 + $0x118] sm:$0xff]
        %v1970 = vld [vmem:[#allocation5 + $0x120] sm:$0xff]
        %v1971 = vld [vmem:[#allocation5 + $0x128] sm:$0xff]
        %v1972 = vld [vmem:[#allocation5 + $0x130] sm:$0xff]
        %v1973 = vld [vmem:[#allocation5 + $0x138] sm:$0xff]
        %v1974 = vld [vmem:[#allocation5 + $0x140] sm:$0xff]
        %v1975 = vld [vmem:[#allocation5 + $0x148] sm:$0xff]
        %v1976 = vld [vmem:[#allocation5 + $0x150] sm:$0xff]
        %v1977 = vld [vmem:[#allocation5 + $0x158] sm:$0xff]
        %v1978 = vld [vmem:[#allocation5 + $0x160] sm:$0xff]
        %v1979 = vld [vmem:[#allocation5 + $0x168] sm:$0xff]
        %v1980 = vld [vmem:[#allocation5 + $0x170] sm:$0xff]
        %v1981 = vld [vmem:[#allocation5 + $0x178] sm:$0xff]
        %v1982 = vld [vmem:[#allocation5 + $0x180] sm:$0xff]
        %v1983 = vld [vmem:[#allocation5 + $0x188] sm:$0xff]
        %v1984 = vld [vmem:[#allocation5 + $0x190] sm:$0xff]
        %v1985 = vld [vmem:[#allocation5 + $0x198] sm:$0xff]
        %v1986 = vld [vmem:[#allocation5 + $0x1a0] sm:$0xff]
        %v1987 = vld [vmem:[#allocation5 + $0x1a8] sm:$0xff]
        %v1988 = vld [vmem:[#allocation5 + $0x1b0] sm:$0xff]
        %v1989 = vld [vmem:[#allocation5 + $0x1b8] sm:$0xff]
        %v1990 = vld [vmem:[#allocation5 + $0x1c0] sm:$0xff]
        %v1991 = vld [vmem:[#allocation5 + $0x1c8] sm:$0xff]
        %v1992 = vld [vmem:[#allocation5 + $0x1d0] sm:$0xff]
        %v1993 = vld [vmem:[#allocation5 + $0x1d8] sm:$0xff]
        %v1994 = vld [vmem:[#allocation5 + $0x1e0] sm:$0xff]
        %v1995 = vld [vmem:[#allocation5 + $0x1e8] sm:$0xff]
        %v1996 = vld [vmem:[#allocation5 + $0x1f0] sm:$0xff]
        %v1997 = vld [vmem:[#allocation5 + $0x1f8] sm:$0xff]
        %v1998 = vld [vmem:[%s13] sm:$0xf]
        %v2000 = vlaneseq
        %v2001 = vshrl.u32 %v2000, 7
        %v2002 = vsub.s32 0, %v2001
        %v2003 = vrot.slane %v1998, %v2002
        %v2004 = vlaneseq
        %v2005 = vshrl.u32 %v2004, 7
        %v2006 = vsub.s32 1, %v2005
        %v2007 = vrot.slane %v1998, %v2006
        %v2008 = vlaneseq
        %v2009 = vshrl.u32 %v2008, 7
        %v2010 = vsub.s32 2, %v2009
        %v2011 = vrot.slane %v1998, %v2010
        %v2012 = vlaneseq
        %v2013 = vshrl.u32 %v2012, 7
        %v2014 = vsub.s32 3, %v2013
        %v2015 = vrot.slane %v1998, %v2014
        %v2084 = vunpack.c.l.b16 %v1934
        %v2085 = vunpack.c.h.b16 %v1934
        %v2086 = vunpack.c.l.b16 %v1935
        %v2087 = vunpack.c.h.b16 %v1935
        %v2088 = vunpack.c.l.b16 %v1936
        %v2089 = vunpack.c.h.b16 %v1936
        %v2090 = vunpack.c.l.b16 %v1937
        %v2091 = vunpack.c.h.b16 %v1937
        %v2092 = vunpack.c.l.b16 %v1938
        %v2093 = vunpack.c.h.b16 %v1938
        %v2094 = vunpack.c.l.b16 %v1939
        %v2095 = vunpack.c.h.b16 %v1939
        %v2096 = vunpack.c.l.b16 %v1940
        %v2097 = vunpack.c.h.b16 %v1940
        %v2098 = vunpack.c.l.b16 %v1941
        %v2099 = vunpack.c.h.b16 %v1941
        %v2100 = vunpack.c.l.b16 %v1942
        %v2101 = vunpack.c.h.b16 %v1942
        %v2102 = vunpack.c.l.b16 %v1943
        %v2103 = vunpack.c.h.b16 %v1943
        %v2104 = vunpack.c.l.b16 %v1944
        %v2105 = vunpack.c.h.b16 %v1944
        %v2106 = vunpack.c.l.b16 %v1945
        %v2107 = vunpack.c.h.b16 %v1945
        %v2108 = vunpack.c.l.b16 %v1946
        %v2109 = vunpack.c.h.b16 %v1946
        %v2110 = vunpack.c.l.b16 %v1947
        %v2111 = vunpack.c.h.b16 %v1947
        %v2112 = vunpack.c.l.b16 %v1948
        %v2113 = vunpack.c.h.b16 %v1948
        %v2114 = vunpack.c.l.b16 %v1949
        %v2115 = vunpack.c.h.b16 %v1949
        %v2116 = vunpack.c.l.b16 %v1950
        %v2117 = vunpack.c.h.b16 %v1950
        %v2118 = vunpack.c.l.b16 %v1951
        %v2119 = vunpack.c.h.b16 %v1951
        %v2120 = vunpack.c.l.b16 %v1952
        %v2121 = vunpack.c.h.b16 %v1952
        %v2122 = vunpack.c.l.b16 %v1953
        %v2123 = vunpack.c.h.b16 %v1953
        %v2124 = vunpack.c.l.b16 %v1954
        %v2125 = vunpack.c.h.b16 %v1954
        %v2126 = vunpack.c.l.b16 %v1955
        %v2127 = vunpack.c.h.b16 %v1955
        %v2128 = vunpack.c.l.b16 %v1956
        %v2129 = vunpack.c.h.b16 %v1956
        %v2130 = vunpack.c.l.b16 %v1957
        %v2131 = vunpack.c.h.b16 %v1957
        %v2132 = vunpack.c.l.b16 %v1958
        %v2133 = vunpack.c.h.b16 %v1958
        %v2134 = vunpack.c.l.b16 %v1959
        %v2135 = vunpack.c.h.b16 %v1959
        %v2136 = vunpack.c.l.b16 %v1960
        %v2137 = vunpack.c.h.b16 %v1960
        %v2138 = vunpack.c.l.b16 %v1961
        %v2139 = vunpack.c.h.b16 %v1961
        %v2140 = vunpack.c.l.b16 %v1962
        %v2141 = vunpack.c.h.b16 %v1962
        %v2142 = vunpack.c.l.b16 %v1963
        %v2143 = vunpack.c.h.b16 %v1963
        %v2144 = vunpack.c.l.b16 %v1964
        %v2145 = vunpack.c.h.b16 %v1964
        %v2146 = vunpack.c.l.b16 %v1965
        %v2147 = vunpack.c.h.b16 %v1965
        %v2148 = vunpack.c.l.b16 %v1966
        %v2149 = vunpack.c.h.b16 %v1966
        %v2150 = vunpack.c.l.b16 %v1967
        %v2151 = vunpack.c.h.b16 %v1967
        %v2152 = vunpack.c.l.b16 %v1968
        %v2153 = vunpack.c.h.b16 %v1968
        %v2154 = vunpack.c.l.b16 %v1969
        %v2155 = vunpack.c.h.b16 %v1969
        %v2156 = vunpack.c.l.b16 %v1970
        %v2157 = vunpack.c.h.b16 %v1970
        %v2158 = vunpack.c.l.b16 %v1971
        %v2159 = vunpack.c.h.b16 %v1971
        %v2160 = vunpack.c.l.b16 %v1972
        %v2161 = vunpack.c.h.b16 %v1972
        %v2162 = vunpack.c.l.b16 %v1973
        %v2163 = vunpack.c.h.b16 %v1973
        %v2164 = vunpack.c.l.b16 %v1974
        %v2165 = vunpack.c.h.b16 %v1974
        %v2166 = vunpack.c.l.b16 %v1975
        %v2167 = vunpack.c.h.b16 %v1975
        %v2168 = vunpack.c.l.b16 %v1976
        %v2169 = vunpack.c.h.b16 %v1976
        %v2170 = vunpack.c.l.b16 %v1977
        %v2171 = vunpack.c.h.b16 %v1977
        %v2172 = vunpack.c.l.b16 %v1978
        %v2173 = vunpack.c.h.b16 %v1978
        %v2174 = vunpack.c.l.b16 %v1979
        %v2175 = vunpack.c.h.b16 %v1979
        %v2176 = vunpack.c.l.b16 %v1980
        %v2177 = vunpack.c.h.b16 %v1980
        %v2178 = vunpack.c.l.b16 %v1981
        %v2179 = vunpack.c.h.b16 %v1981
        %v2180 = vunpack.c.l.b16 %v1982
        %v2181 = vunpack.c.h.b16 %v1982
        %v2182 = vunpack.c.l.b16 %v1983
        %v2183 = vunpack.c.h.b16 %v1983
        %v2184 = vunpack.c.l.b16 %v1984
        %v2185 = vunpack.c.h.b16 %v1984
        %v2186 = vunpack.c.l.b16 %v1985
        %v2187 = vunpack.c.h.b16 %v1985
        %v2188 = vunpack.c.l.b16 %v1986
        %v2189 = vunpack.c.h.b16 %v1986
        %v2190 = vunpack.c.l.b16 %v1987
        %v2191 = vunpack.c.h.b16 %v1987
        %v2192 = vunpack.c.l.b16 %v1988
        %v2193 = vunpack.c.h.b16 %v1988
        %v2194 = vunpack.c.l.b16 %v1989
        %v2195 = vunpack.c.h.b16 %v1989
        %v2196 = vunpack.c.l.b16 %v1990
        %v2197 = vunpack.c.h.b16 %v1990
        %v2198 = vunpack.c.l.b16 %v1991
        %v2199 = vunpack.c.h.b16 %v1991
        %v2200 = vunpack.c.l.b16 %v1992
        %v2201 = vunpack.c.h.b16 %v1992
        %v2202 = vunpack.c.l.b16 %v1993
        %v2203 = vunpack.c.h.b16 %v1993
        %v2204 = vunpack.c.l.b16 %v1994
        %v2205 = vunpack.c.h.b16 %v1994
        %v2206 = vunpack.c.l.b16 %v1995
        %v2207 = vunpack.c.h.b16 %v1995
        %v2208 = vunpack.c.l.b16 %v1996
        %v2209 = vunpack.c.h.b16 %v1996
        %v2210 = vunpack.c.l.b16 %v1997
        %v2211 = vunpack.c.h.b16 %v1997
        %v2212 = vpack.c.b16 %v2088, %v2084
        %v2213 = vpack.c.b16 %v2089, %v2085
        %v2214 = vpack.c.b16 %v2090, %v2086
        %v2215 = vpack.c.b16 %v2091, %v2087
        %v2216 = vpack.c.b16 %v2096, %v2092
        %v2217 = vpack.c.b16 %v2097, %v2093
        %v2218 = vpack.c.b16 %v2098, %v2094
        %v2219 = vpack.c.b16 %v2099, %v2095
        %v2220 = vpack.c.b16 %v2104, %v2100
        %v2221 = vpack.c.b16 %v2105, %v2101
        %v2222 = vpack.c.b16 %v2106, %v2102
        %v2223 = vpack.c.b16 %v2107, %v2103
        %v2224 = vpack.c.b16 %v2112, %v2108
        %v2225 = vpack.c.b16 %v2113, %v2109
        %v2226 = vpack.c.b16 %v2114, %v2110
        %v2227 = vpack.c.b16 %v2115, %v2111
        %v2228 = vpack.c.b16 %v2120, %v2116
        %v2229 = vpack.c.b16 %v2121, %v2117
        %v2230 = vpack.c.b16 %v2122, %v2118
        %v2231 = vpack.c.b16 %v2123, %v2119
        %v2232 = vpack.c.b16 %v2128, %v2124
        %v2233 = vpack.c.b16 %v2129, %v2125
        %v2234 = vpack.c.b16 %v2130, %v2126
        %v2235 = vpack.c.b16 %v2131, %v2127
        %v2236 = vpack.c.b16 %v2136, %v2132
        %v2237 = vpack.c.b16 %v2137, %v2133
        %v2238 = vpack.c.b16 %v2138, %v2134
        %v2239 = vpack.c.b16 %v2139, %v2135
        %v2240 = vpack.c.b16 %v2144, %v2140
        %v2241 = vpack.c.b16 %v2145, %v2141
        %v2242 = vpack.c.b16 %v2146, %v2142
        %v2243 = vpack.c.b16 %v2147, %v2143
        %v2244 = vpack.c.b16 %v2152, %v2148
        %v2245 = vpack.c.b16 %v2153, %v2149
        %v2246 = vpack.c.b16 %v2154, %v2150
        %v2247 = vpack.c.b16 %v2155, %v2151
        %v2248 = vpack.c.b16 %v2160, %v2156
        %v2249 = vpack.c.b16 %v2161, %v2157
        %v2250 = vpack.c.b16 %v2162, %v2158
        %v2251 = vpack.c.b16 %v2163, %v2159
        %v2252 = vpack.c.b16 %v2168, %v2164
        %v2253 = vpack.c.b16 %v2169, %v2165
        %v2254 = vpack.c.b16 %v2170, %v2166
        %v2255 = vpack.c.b16 %v2171, %v2167
        %v2256 = vpack.c.b16 %v2176, %v2172
        %v2257 = vpack.c.b16 %v2177, %v2173
        %v2258 = vpack.c.b16 %v2178, %v2174
        %v2259 = vpack.c.b16 %v2179, %v2175
        %v2260 = vpack.c.b16 %v2184, %v2180
        %v2261 = vpack.c.b16 %v2185, %v2181
        %v2262 = vpack.c.b16 %v2186, %v2182
        %v2263 = vpack.c.b16 %v2187, %v2183
        %v2264 = vpack.c.b16 %v2192, %v2188
        %v2265 = vpack.c.b16 %v2193, %v2189
        %v2266 = vpack.c.b16 %v2194, %v2190
        %v2267 = vpack.c.b16 %v2195, %v2191
        %v2268 = vpack.c.b16 %v2200, %v2196
        %v2269 = vpack.c.b16 %v2201, %v2197
        %v2270 = vpack.c.b16 %v2202, %v2198
        %v2271 = vpack.c.b16 %v2203, %v2199
        %v2272 = vpack.c.b16 %v2208, %v2204
        %v2273 = vpack.c.b16 %v2209, %v2205
        %v2274 = vpack.c.b16 %v2210, %v2206
        %v2275 = vpack.c.b16 %v2211, %v2207
        %2340 = vmatprep.subr.bf16.mxu0 %v2241
        %2341 = vmatpush1.bf16.msra.mxu0 %v2240
        %2342 = vmatprep.subr.bf16.mxu0 %v2237
        %2343 = vmatpush1.bf16.msra.mxu0 %v2236
        %2344 = vmatprep.subr.bf16.mxu0 %v2233
        %2345 = vmatpush1.bf16.msra.mxu0 %v2232
        %2346 = vmatprep.subr.bf16.mxu0 %v2229
        %2347 = vmatpush1.bf16.msra.mxu0 %v2228
        %2348 = vmatprep.subr.bf16.mxu0 %v2225
        %2349 = vmatpush1.bf16.msra.mxu0 %v2224
        %2350 = vmatprep.subr.bf16.mxu0 %v2221
        %2351 = vmatpush1.bf16.msra.mxu0 %v2220
        %2352 = vmatprep.subr.bf16.mxu0 %v2217
        %2353 = vmatpush1.bf16.msra.mxu0 %v2216
        %2354 = vmatprep.subr.bf16.mxu0 %v2213
        %2355 = vmatpush1.bf16.msra.mxu0 %v2212
        %2356 = vmatprep.subr.bf16.mxu0 %v2273
        %2357 = vmatpush2.bf16.msra.mxu0 %v2272
        %2358 = vmatprep.subr.bf16.mxu0 %v2269
        %2359 = vmatpush2.bf16.msra.mxu0 %v2268
        %2360 = vmatprep.subr.bf16.mxu0 %v2265
        %2361 = vmatpush2.bf16.msra.mxu0 %v2264
        %2362 = vmatprep.subr.bf16.mxu0 %v2261
        %2363 = vmatpush2.bf16.msra.mxu0 %v2260
        %2364 = vmatprep.subr.bf16.mxu0 %v2257
        %2365 = vmatpush2.bf16.msra.mxu0 %v2256
        %2366 = vmatprep.subr.bf16.mxu0 %v2253
        %2367 = vmatpush2.bf16.msra.mxu0 %v2252
        %2368 = vmatprep.subr.bf16.mxu0 %v2249
        %2369 = vmatpush2.bf16.msra.mxu0 %v2248
        %2370 = vmatprep.subr.bf16.mxu0 %v2245
        %2371 = vmatpush2.bf16.msra.mxu0 %v2244
        %2372 = vmatprep.mubr.bf16.mxu0 %v1931
        %2373 = vmatmul.mubr.bf16.gmra.mxu0 %v1930
        %v2374 = vpop.f32.mrf.mxu0
        %v2375 = vadd.f32 %v2003, %v2374
        %v2376 = vpop.f32.mrf.mxu0
        %v2377 = vadd.f32 %v2007, %v2376
        %v2378 = vpop.f32.mrf.mxu0
        %v2379 = vadd.f32 %v2003, %v2378
        %v2380 = vpop.f32.mrf.mxu0
        %v2381 = vadd.f32 %v2007, %v2380
        %2382 = vmatprep.mubr.bf16.mxu0 %v1933
        %2383 = vmatmul.mubr.bf16.gmra.mxu0 %v1932
        %v2384 = vpop.f32.mrf.mxu0
        %v2385 = vadd.f32 %v2003, %v2384
        %v2386 = vpop.f32.mrf.mxu0
        %v2387 = vadd.f32 %v2007, %v2386
        %v2388 = vpop.f32.mrf.mxu0
        %v2389 = vadd.f32 %v2003, %v2388
        %v2390 = vpop.f32.mrf.mxu0
        %v2391 = vadd.f32 %v2007, %v2390
        %2392 = vdwg.mxu0
        %2393 = vmatprep.subr.bf16.mxu0 %v2243
        %2394 = vmatpush1.bf16.msra.mxu0 %v2242
        %2395 = vmatprep.subr.bf16.mxu0 %v2239
        %2396 = vmatpush1.bf16.msra.mxu0 %v2238
        %2397 = vmatprep.subr.bf16.mxu0 %v2235
        %2398 = vmatpush1.bf16.msra.mxu0 %v2234
        %2399 = vmatprep.subr.bf16.mxu0 %v2231
        %2400 = vmatpush1.bf16.msra.mxu0 %v2230
        %2401 = vmatprep.subr.bf16.mxu0 %v2227
        %2402 = vmatpush1.bf16.msra.mxu0 %v2226
        %2403 = vmatprep.subr.bf16.mxu0 %v2223
        %2404 = vmatpush1.bf16.msra.mxu0 %v2222
        %2405 = vmatprep.subr.bf16.mxu0 %v2219
        %2406 = vmatpush1.bf16.msra.mxu0 %v2218
        %2407 = vmatprep.subr.bf16.mxu0 %v2215
        %2408 = vmatpush1.bf16.msra.mxu0 %v2214
        %2409 = vmatprep.subr.bf16.mxu0 %v2275
        %2410 = vmatpush2.bf16.msra.mxu0 %v2274
        %2411 = vmatprep.subr.bf16.mxu0 %v2271
        %2412 = vmatpush2.bf16.msra.mxu0 %v2270
        %2413 = vmatprep.subr.bf16.mxu0 %v2267
        %2414 = vmatpush2.bf16.msra.mxu0 %v2266
        %2415 = vmatprep.subr.bf16.mxu0 %v2263
        %2416 = vmatpush2.bf16.msra.mxu0 %v2262
        %2417 = vmatprep.subr.bf16.mxu0 %v2259
        %2418 = vmatpush2.bf16.msra.mxu0 %v2258
        %2419 = vmatprep.subr.bf16.mxu0 %v2255
        %2420 = vmatpush2.bf16.msra.mxu0 %v2254
        %2421 = vmatprep.subr.bf16.mxu0 %v2251
        %2422 = vmatpush2.bf16.msra.mxu0 %v2250
        %2423 = vmatprep.subr.bf16.mxu0 %v2247
        %2424 = vmatpush2.bf16.msra.mxu0 %v2246
        %2425 = vmatprep.mubr.bf16.mxu0 %v1931
        %2426 = vmatmul.mubr.bf16.gmra.mxu0 %v1930
        %v2427 = vpop.f32.mrf.mxu0
        %v2428 = vadd.f32 %v2011, %v2427
        %v2429 = vpop.f32.mrf.mxu0
        %v2430 = vadd.f32 %v2015, %v2429
        %v2431 = vpop.f32.mrf.mxu0
        %v2432 = vadd.f32 %v2011, %v2431
        %v2433 = vpop.f32.mrf.mxu0
        %v2434 = vadd.f32 %v2015, %v2433
        %2435 = vmatprep.mubr.bf16.mxu0 %v1933
        %2436 = vmatmul.mubr.bf16.gmra.mxu0 %v1932
        %v2437 = vpop.f32.mrf.mxu0
        %v2438 = vadd.f32 %v2011, %v2437
        %v2439 = vpop.f32.mrf.mxu0
        %v2440 = vadd.f32 %v2015, %v2439
        %v2441 = vpop.f32.mrf.mxu0
        %v2442 = vadd.f32 %v2011, %v2441
        %v2443 = vpop.f32.mrf.mxu0
        %v2444 = vadd.f32 %v2015, %v2443
        %2445 = vdwg.mxu0
        %v2446 = vmax.f32 %v2375, 0.0
        %v2447 = vmax.f32 %v2377, 0.0
        %v2448 = vmax.f32 %v2428, 0.0
        %v2449 = vmax.f32 %v2430, 0.0
        %v2450 = vmax.f32 %v2379, 0.0
        %v2451 = vmax.f32 %v2381, 0.0
        %v2452 = vmax.f32 %v2432, 0.0
        %v2453 = vmax.f32 %v2434, 0.0
        %v2454 = vmax.f32 %v2385, 0.0
        %v2455 = vmax.f32 %v2387, 0.0
        %v2456 = vmax.f32 %v2438, 0.0
        %v2457 = vmax.f32 %v2440, 0.0
        %v2458 = vmax.f32 %v2389, 0.0
        %v2459 = vmax.f32 %v2391, 0.0
        %v2460 = vmax.f32 %v2442, 0.0
        %v2461 = vmax.f32 %v2444, 0.0
        %v2462 = vpack.c.bf16 %v2450, %v2446
        %v2463 = vpack.c.bf16 %v2451, %v2447
        %v2464 = vpack.c.bf16 %v2452, %v2448
        %v2465 = vpack.c.bf16 %v2453, %v2449
        %v2466 = vpack.c.bf16 %v2458, %v2454
        %v2467 = vpack.c.bf16 %v2459, %v2455
        %v2468 = vpack.c.bf16 %v2460, %v2456
        %v2469 = vpack.c.bf16 %v2461, %v2457
        %v2470 = vld [vmem:[%s14] sm:$0xf]
        %v2471 = vld [vmem:[%s14 + $0x4] sm:$0xf]
        %v2472 = vld [vmem:[%s14 + $0x8] sm:$0xf]
        %v2473 = vld [vmem:[%s14 + $0xc] sm:$0xf]
        %v2474 = vld [vmem:[%s14 + $0x10] sm:$0xf]
        %v2475 = vld [vmem:[%s14 + $0x14] sm:$0xf]
        %v2476 = vld [vmem:[%s14 + $0x18] sm:$0xf]
        %v2477 = vld [vmem:[%s14 + $0x1c] sm:$0xf]
        %v2478 = vld [vmem:[%s14 + $0x20] sm:$0xf]
        %v2479 = vld [vmem:[%s14 + $0x24] sm:$0xf]
        %v2480 = vld [vmem:[%s14 + $0x28] sm:$0xf]
        %v2481 = vld [vmem:[%s14 + $0x2c] sm:$0xf]
        %v2482 = vld [vmem:[%s14 + $0x30] sm:$0xf]
        %v2483 = vld [vmem:[%s14 + $0x34] sm:$0xf]
        %v2484 = vld [vmem:[%s14 + $0x38] sm:$0xf]
        %v2485 = vld [vmem:[%s14 + $0x3c] sm:$0xf]
        %v2486 = vld [vmem:[%s14 + $0x40] sm:$0xf]
        %v2487 = vld [vmem:[%s14 + $0x44] sm:$0xf]
        %v2488 = vld [vmem:[%s14 + $0x48] sm:$0xf]
        %v2489 = vld [vmem:[%s14 + $0x4c] sm:$0xf]
        %v2490 = vld [vmem:[%s14 + $0x50] sm:$0xf]
        %v2491 = vld [vmem:[%s14 + $0x54] sm:$0xf]
        %v2492 = vld [vmem:[%s14 + $0x58] sm:$0xf]
        %v2493 = vld [vmem:[%s14 + $0x5c] sm:$0xf]
        %v2494 = vld [vmem:[%s14 + $0x60] sm:$0xf]
        %v2495 = vld [vmem:[%s14 + $0x64] sm:$0xf]
        %v2496 = vld [vmem:[%s14 + $0x68] sm:$0xf]
        %v2497 = vld [vmem:[%s14 + $0x6c] sm:$0xf]
        %v2498 = vld [vmem:[%s14 + $0x70] sm:$0xf]
        %v2499 = vld [vmem:[%s14 + $0x74] sm:$0xf]
        %v2500 = vld [vmem:[%s14 + $0x78] sm:$0xf]
        %v2501 = vld [vmem:[%s14 + $0x7c] sm:$0xf]
        %v2502 = vld [vmem:[%s14 + $0x80] sm:$0xf]
        %v2503 = vld [vmem:[%s14 + $0x84] sm:$0xf]
        %v2504 = vld [vmem:[%s14 + $0x88] sm:$0xf]
        %v2505 = vld [vmem:[%s14 + $0x8c] sm:$0xf]
        %v2506 = vld [vmem:[%s14 + $0x90] sm:$0xf]
        %v2507 = vld [vmem:[%s14 + $0x94] sm:$0xf]
        %v2508 = vld [vmem:[%s14 + $0x98] sm:$0xf]
        %v2509 = vld [vmem:[%s14 + $0x9c] sm:$0xf]
        %v2510 = vld [vmem:[%s14 + $0xa0] sm:$0xf]
        %v2511 = vld [vmem:[%s14 + $0xa4] sm:$0xf]
        %v2512 = vld [vmem:[%s14 + $0xa8] sm:$0xf]
        %v2513 = vld [vmem:[%s14 + $0xac] sm:$0xf]
        %v2514 = vld [vmem:[%s14 + $0xb0] sm:$0xf]
        %v2515 = vld [vmem:[%s14 + $0xb4] sm:$0xf]
        %v2516 = vld [vmem:[%s14 + $0xb8] sm:$0xf]
        %v2517 = vld [vmem:[%s14 + $0xbc] sm:$0xf]
        %v2518 = vld [vmem:[%s14 + $0xc0] sm:$0xf]
        %v2519 = vld [vmem:[%s14 + $0xc4] sm:$0xf]
        %v2520 = vld [vmem:[%s14 + $0xc8] sm:$0xf]
        %v2521 = vld [vmem:[%s14 + $0xcc] sm:$0xf]
        %v2522 = vld [vmem:[%s14 + $0xd0] sm:$0xf]
        %v2523 = vld [vmem:[%s14 + $0xd4] sm:$0xf]
        %v2524 = vld [vmem:[%s14 + $0xd8] sm:$0xf]
        %v2525 = vld [vmem:[%s14 + $0xdc] sm:$0xf]
        %v2526 = vld [vmem:[%s14 + $0xe0] sm:$0xf]
        %v2527 = vld [vmem:[%s14 + $0xe4] sm:$0xf]
        %v2528 = vld [vmem:[%s14 + $0xe8] sm:$0xf]
        %v2529 = vld [vmem:[%s14 + $0xec] sm:$0xf]
        %v2530 = vld [vmem:[%s14 + $0xf0] sm:$0xf]
        %v2531 = vld [vmem:[%s14 + $0xf4] sm:$0xf]
        %v2532 = vld [vmem:[%s14 + $0xf8] sm:$0xf]
        %v2533 = vld [vmem:[%s14 + $0xfc] sm:$0xf]
        %v2534 = vld [vmem:[%s15] sm:$0x1]
        %v2536 = vlaneseq
        %v2537 = vshrl.u32 %v2536, 7
        %v2538 = vsub.s32 0, %v2537
        %v2539 = vrot.slane %v2534, %v2538
        %v2605 = vunpack.c.l.b16 %v2470
        %v2606 = vunpack.c.l.b16 %v2471
        %v2607 = vunpack.c.l.b16 %v2472
        %v2608 = vunpack.c.l.b16 %v2473
        %v2609 = vunpack.c.l.b16 %v2474
        %v2610 = vunpack.c.l.b16 %v2475
        %v2611 = vunpack.c.l.b16 %v2476
        %v2612 = vunpack.c.l.b16 %v2477
        %v2613 = vunpack.c.l.b16 %v2478
        %v2614 = vunpack.c.l.b16 %v2479
        %v2615 = vunpack.c.l.b16 %v2480
        %v2616 = vunpack.c.l.b16 %v2481
        %v2617 = vunpack.c.l.b16 %v2482
        %v2618 = vunpack.c.l.b16 %v2483
        %v2619 = vunpack.c.l.b16 %v2484
        %v2620 = vunpack.c.l.b16 %v2485
        %v2621 = vunpack.c.l.b16 %v2486
        %v2622 = vunpack.c.l.b16 %v2487
        %v2623 = vunpack.c.l.b16 %v2488
        %v2624 = vunpack.c.l.b16 %v2489
        %v2625 = vunpack.c.l.b16 %v2490
        %v2626 = vunpack.c.l.b16 %v2491
        %v2627 = vunpack.c.l.b16 %v2492
        %v2628 = vunpack.c.l.b16 %v2493
        %v2629 = vunpack.c.l.b16 %v2494
        %v2630 = vunpack.c.l.b16 %v2495
        %v2631 = vunpack.c.l.b16 %v2496
        %v2632 = vunpack.c.l.b16 %v2497
        %v2633 = vunpack.c.l.b16 %v2498
        %v2634 = vunpack.c.l.b16 %v2499
        %v2635 = vunpack.c.l.b16 %v2500
        %v2636 = vunpack.c.l.b16 %v2501
        %v2637 = vunpack.c.l.b16 %v2502
        %v2638 = vunpack.c.l.b16 %v2503
        %v2639 = vunpack.c.l.b16 %v2504
        %v2640 = vunpack.c.l.b16 %v2505
        %v2641 = vunpack.c.l.b16 %v2506
        %v2642 = vunpack.c.l.b16 %v2507
        %v2643 = vunpack.c.l.b16 %v2508
        %v2644 = vunpack.c.l.b16 %v2509
        %v2645 = vunpack.c.l.b16 %v2510
        %v2646 = vunpack.c.l.b16 %v2511
        %v2647 = vunpack.c.l.b16 %v2512
        %v2648 = vunpack.c.l.b16 %v2513
        %v2649 = vunpack.c.l.b16 %v2514
        %v2650 = vunpack.c.l.b16 %v2515
        %v2651 = vunpack.c.l.b16 %v2516
        %v2652 = vunpack.c.l.b16 %v2517
        %v2653 = vunpack.c.l.b16 %v2518
        %v2654 = vunpack.c.l.b16 %v2519
        %v2655 = vunpack.c.l.b16 %v2520
        %v2656 = vunpack.c.l.b16 %v2521
        %v2657 = vunpack.c.l.b16 %v2522
        %v2658 = vunpack.c.l.b16 %v2523
        %v2659 = vunpack.c.l.b16 %v2524
        %v2660 = vunpack.c.l.b16 %v2525
        %v2661 = vunpack.c.l.b16 %v2526
        %v2662 = vunpack.c.l.b16 %v2527
        %v2663 = vunpack.c.l.b16 %v2528
        %v2664 = vunpack.c.l.b16 %v2529
        %v2665 = vunpack.c.l.b16 %v2530
        %v2666 = vunpack.c.l.b16 %v2531
        %v2667 = vunpack.c.l.b16 %v2532
        %v2668 = vunpack.c.l.b16 %v2533
        %v2669 = vpack.c.b16 %v2606, %v2605
        %v2670 = vpack.c.b16 %v2608, %v2607
        %v2671 = vpack.c.b16 %v2610, %v2609
        %v2672 = vpack.c.b16 %v2612, %v2611
        %v2673 = vpack.c.b16 %v2614, %v2613
        %v2674 = vpack.c.b16 %v2616, %v2615
        %v2675 = vpack.c.b16 %v2618, %v2617
        %v2676 = vpack.c.b16 %v2620, %v2619
        %v2677 = vpack.c.b16 %v2622, %v2621
        %v2678 = vpack.c.b16 %v2624, %v2623
        %v2679 = vpack.c.b16 %v2626, %v2625
        %v2680 = vpack.c.b16 %v2628, %v2627
        %v2681 = vpack.c.b16 %v2630, %v2629
        %v2682 = vpack.c.b16 %v2632, %v2631
        %v2683 = vpack.c.b16 %v2634, %v2633
        %v2684 = vpack.c.b16 %v2636, %v2635
        %v2685 = vpack.c.b16 %v2638, %v2637
        %v2686 = vpack.c.b16 %v2640, %v2639
        %v2687 = vpack.c.b16 %v2642, %v2641
        %v2688 = vpack.c.b16 %v2644, %v2643
        %v2689 = vpack.c.b16 %v2646, %v2645
        %v2690 = vpack.c.b16 %v2648, %v2647
        %v2691 = vpack.c.b16 %v2650, %v2649
        %v2692 = vpack.c.b16 %v2652, %v2651
        %v2693 = vpack.c.b16 %v2654, %v2653
        %v2694 = vpack.c.b16 %v2656, %v2655
        %v2695 = vpack.c.b16 %v2658, %v2657
        %v2696 = vpack.c.b16 %v2660, %v2659
        %v2697 = vpack.c.b16 %v2662, %v2661
        %v2698 = vpack.c.b16 %v2664, %v2663
        %v2699 = vpack.c.b16 %v2666, %v2665
        %v2700 = vpack.c.b16 %v2668, %v2667
        %2733 = vmatprep.subr.bf16.mxu0 0
        %2734 = vmatpush1.bf16.msra.mxu0 %v2676
        %2735 = vmatprep.subr.bf16.mxu0 0
        %2736 = vmatpush1.bf16.msra.mxu0 %v2675
        %2737 = vmatprep.subr.bf16.mxu0 0
        %2738 = vmatpush1.bf16.msra.mxu0 %v2674
        %2739 = vmatprep.subr.bf16.mxu0 0
        %2740 = vmatpush1.bf16.msra.mxu0 %v2673
        %2741 = vmatprep.subr.bf16.mxu0 0
        %2742 = vmatpush1.bf16.msra.mxu0 %v2672
        %2743 = vmatprep.subr.bf16.mxu0 0
        %2744 = vmatpush1.bf16.msra.mxu0 %v2671
        %2745 = vmatprep.subr.bf16.mxu0 0
        %2746 = vmatpush1.bf16.msra.mxu0 %v2670
        %2747 = vmatprep.subr.bf16.mxu0 0
        %2748 = vmatpush1.bf16.msra.mxu0 %v2669
        %2749 = vmatprep.subr.bf16.mxu0 0
        %2750 = vmatpush2.bf16.msra.mxu0 %v2684
        %2751 = vmatprep.subr.bf16.mxu0 0
        %2752 = vmatpush2.bf16.msra.mxu0 %v2683
        %2753 = vmatprep.subr.bf16.mxu0 0
        %2754 = vmatpush2.bf16.msra.mxu0 %v2682
        %2755 = vmatprep.subr.bf16.mxu0 0
        %2756 = vmatpush2.bf16.msra.mxu0 %v2681
        %2757 = vmatprep.subr.bf16.mxu0 0
        %2758 = vmatpush2.bf16.msra.mxu0 %v2680
        %2759 = vmatprep.subr.bf16.mxu0 0
        %2760 = vmatpush2.bf16.msra.mxu0 %v2679
        %2761 = vmatprep.subr.bf16.mxu0 0
        %2762 = vmatpush2.bf16.msra.mxu0 %v2678
        %2763 = vmatprep.subr.bf16.mxu0 0
        %2764 = vmatpush2.bf16.msra.mxu0 %v2677
        %2765 = vmatprep.mubr.bf16.mxu0 %v2463
        %2766 = vmatmul.mubr.bf16.gmra.mxu0 %v2462
        %v2767 = vpop.f32.mrf.mxu0
        %v2768 = vadd.f32 %v2539, %v2767
        %v2769 = vpop.f32.mrf.mxu0
        %v2770 = vpop.f32.mrf.mxu0
        %v2771 = vadd.f32 %v2539, %v2770
        %v2772 = vpop.f32.mrf.mxu0
        %2773 = vmatprep.mubr.bf16.mxu0 %v2467
        %2774 = vmatmul.mubr.bf16.gmra.mxu0 %v2466
        %v2775 = vpop.f32.mrf.mxu0
        %v2776 = vadd.f32 %v2539, %v2775
        %v2777 = vpop.f32.mrf.mxu0
        %v2778 = vpop.f32.mrf.mxu0
        %v2779 = vadd.f32 %v2539, %v2778
        %v2780 = vpop.f32.mrf.mxu0
        %2781 = vdwg.mxu0
        %2782 = vmatprep.subr.bf16.mxu0 0
        %2783 = vmatpush1.bf16.msra.mxu0 %v2692
        %2784 = vmatprep.subr.bf16.mxu0 0
        %2785 = vmatpush1.bf16.msra.mxu0 %v2691
        %2786 = vmatprep.subr.bf16.mxu0 0
        %2787 = vmatpush1.bf16.msra.mxu0 %v2690
        %2788 = vmatprep.subr.bf16.mxu0 0
        %2789 = vmatpush1.bf16.msra.mxu0 %v2689
        %2790 = vmatprep.subr.bf16.mxu0 0
        %2791 = vmatpush1.bf16.msra.mxu0 %v2688
        %2792 = vmatprep.subr.bf16.mxu0 0
        %2793 = vmatpush1.bf16.msra.mxu0 %v2687
        %2794 = vmatprep.subr.bf16.mxu0 0
        %2795 = vmatpush1.bf16.msra.mxu0 %v2686
        %2796 = vmatprep.subr.bf16.mxu0 0
        %2797 = vmatpush1.bf16.msra.mxu0 %v2685
        %2798 = vmatprep.subr.bf16.mxu0 0
        %2799 = vmatpush2.bf16.msra.mxu0 %v2700
        %2800 = vmatprep.subr.bf16.mxu0 0
        %2801 = vmatpush2.bf16.msra.mxu0 %v2699
        %2802 = vmatprep.subr.bf16.mxu0 0
        %2803 = vmatpush2.bf16.msra.mxu0 %v2698
        %2804 = vmatprep.subr.bf16.mxu0 0
        %2805 = vmatpush2.bf16.msra.mxu0 %v2697
        %2806 = vmatprep.subr.bf16.mxu0 0
        %2807 = vmatpush2.bf16.msra.mxu0 %v2696
        %2808 = vmatprep.subr.bf16.mxu0 0
        %2809 = vmatpush2.bf16.msra.mxu0 %v2695
        %2810 = vmatprep.subr.bf16.mxu0 0
        %2811 = vmatpush2.bf16.msra.mxu0 %v2694
        %2812 = vmatprep.subr.bf16.mxu0 0
        %2813 = vmatpush2.bf16.msra.mxu0 %v2693
        %2814 = vmatprep.mubr.bf16.mxu0 %v2465
        %2815 = vmatmul.mubr.bf16.gmra.mxu0 %v2464
        %v2816 = vpop.f32.mrf.mxu0
        %v2817 = vadd.f32 %v2768, %v2816
        %v2818 = vpop.f32.mrf.mxu0
        %v2819 = vpop.f32.mrf.mxu0
        %v2820 = vadd.f32 %v2771, %v2819
        %v2821 = vpop.f32.mrf.mxu0
        %2822 = vmatprep.mubr.bf16.mxu0 %v2469
        %2823 = vmatmul.mubr.bf16.gmra.mxu0 %v2468
        %v2824 = vpop.f32.mrf.mxu0
        %v2825 = vadd.f32 %v2776, %v2824
        %v2826 = vpop.f32.mrf.mxu0
        %v2827 = vpop.f32.mrf.mxu0
        %v2828 = vadd.f32 %v2779, %v2827
        %v2829 = vpop.f32.mrf.mxu0
        %2830 = vdwg.mxu0
        %2831 = vst.msk [vmem:[%s616] sm:$0xff] %vm781, %v2817
        %2832 = vst.msk [vmem:[%s616 + $0x8] sm:$0xff] %vm781, %v2820
        %2833 = vst.msk [vmem:[%s616 + $0x10] sm:$0xff] %vm781, %v2825
        %2834 = vst.msk [vmem:[%s616 + $0x18] sm:$0xff] %vm781, %v2828
        %2835 = vst.msk [vmem:[%s648] sm:$0xff] %vm1862, %v1602
        %2836 = vst.msk [vmem:[%s648 + $0x8] sm:$0xff] %vm1862, %v1605
        %2837 = vst.msk [vmem:[%s648 + $0x10] sm:$0xff] %vm1862, %v1610
        %2838 = vst.msk [vmem:[%s648 + $0x18] sm:$0xff] %vm1862, %v1613
        %2839 = vst.msk [vmem:[%s654] sm:$0xff] %vm1862, %v1804
        %2840 = vst.msk [vmem:[%s654 + $0x8] sm:$0xff] %vm1862, %v1805
        %2841 = vst.msk [vmem:[%s654 + $0x10] sm:$0xff] %vm1862, %v1806
        %2842 = vst.msk [vmem:[%s654 + $0x18] sm:$0xff] %vm1862, %v1807
        %s2843 = sand.u32 %s389, 1
        %s2844 = scalar_lea.sflag [#allocation4], %s2843
        %s2845 = sand.u32 %s389, 1
        %s2846 = smul.addr %s2845, 32
        %s2847 = scalar_lea.vmem [#allocation7], %s2846
        %s2848 = smul.u32 4, %s35
        %p2849 = scmp.lt.s32.totalorder %s2848, 7
        %s2850 = scalar_select %p2849, %s2848, 7
        %s2851 = smul.addr %s2850, 8
        %s2852 = scalar_lea.vmem %s17, %s2851
        %s2853 = smul.u32 4, %s35
        %p2854 = scmp.lt.s32.totalorder %s2853, 7
        %s2855 = scalar_select %p2854, %s2853, 7
        %s2856 = smul.addr %s2855, 8
        %s2857 = scalar_lea.vmem %s18, %s2856
        // Predicated region
        $region93: #{tpu_custom_call.1} parent=83 // pred_check
          %p2858 = pneg %p399
        $region94: #{tpu_custom_call.1} parent=83 // pred_check_branch
          %2860 = sbr.rel (%p2858) target = $region96
        $region95: #{tpu_custom_call.1} parent=83 // pred_region
          %s2861 = smul.u32 4, %s35
          %s2863 = ssub.s32 512, 512
          %2864 = vsyncadd %s2844, %s2863
          %s2865 = smul.addr %s2861, 128
          %s2866 = scalar_lea.hbm %s16, %s2865
          %s2867 = sshll.u32 %s2847, 4
          %s2868 = int_to_ptr.vmem [resolvable:$true] %s2867
          %2873 = dma.vmem_to_hbm [thread:$0]  %s2868, 512, %s2866, %s2844, 128, 128, 8
        $region96: #{tpu_custom_call.1} parent=83 // pred_fallthru
          _
        // Predicated region
        $region97: #{tpu_custom_call.1} parent=83 // pred_check
          %p2874 = pneg %p425
        $region98: #{tpu_custom_call.1} parent=83 // pred_check_branch
          %2876 = sbr.rel (%p2874) target = $region100
        $region99: #{tpu_custom_call.1} parent=83 // pred_region
          %s2877 = smul.u32 4, %s35
        $region100: #{tpu_custom_call.1} parent=83 // pred_fallthru
          _
        // Predicated region
        $region101: #{tpu_custom_call.1} parent=83 // pred_check
          %p2878 = pneg %p451
        $region102: #{tpu_custom_call.1} parent=83 // pred_check_branch
          %2880 = sbr.rel (%p2878) target = $region104
        $region103: #{tpu_custom_call.1} parent=83 // pred_region
          %s2881 = smul.u32 4, %s35
        $region104: #{tpu_custom_call.1} parent=83 // pred_fallthru
          _
      $region84: #{tpu_custom_call.1} parent=5 // pred_fallthru
        _
      %p2882 = scmp.le.s32.totalorder 2, %s30
      // Predicated region
      $region105: #{tpu_custom_call.1} parent=5 // pred_check
        %p2883 = pneg %p2882
      $region106: #{tpu_custom_call.1} parent=5 // pred_check_branch
        %2885 = sbr.rel (%p2883) target = $region108
      $region107: #{tpu_custom_call.1} parent=5 // pred_region
        %s2886 = ssub.s32 %s30, 2
        // Predicated region
        $region109: #{tpu_custom_call.1} parent=107 // pred_check
          %p2887 = pneg %p405
        $region110: #{tpu_custom_call.1} parent=107 // pred_check_branch
          %2889 = sbr.rel (%p2887) target = $region112
        $region111: #{tpu_custom_call.1} parent=107 // pred_region
          %s2890 = sand.u32 %s390, 1
          %s2891 = scalar_lea.sflag [#allocation4], %s2890
          %s2892 = sand.u32 %s390, 1
          %s2893 = smul.addr %s2892, 32
          %s2894 = scalar_lea.vmem [#allocation7], %s2893
          %2895 = dma.done %s2891, 512
        $region112: #{tpu_custom_call.1} parent=107 // pred_fallthru
          _
        // Predicated region
        $region113: #{tpu_custom_call.1} parent=107 // pred_check
          %p2896 = pneg %p431
        $region114: #{tpu_custom_call.1} parent=107 // pred_check_branch
          %2898 = sbr.rel (%p2896) target = $region116
        $region115: #{tpu_custom_call.1} parent=107 // pred_region
          %s2899 = smul.u32 4, %s36
          %p2900 = scmp.lt.s32.totalorder %s2899, 7
          %s2901 = scalar_select %p2900, %s2899, 7
          %s2902 = smul.addr %s2901, 8
          %s2903 = scalar_lea.vmem %s17, %s2902
        $region116: #{tpu_custom_call.1} parent=107 // pred_fallthru
          _
        // Predicated region
        $region117: #{tpu_custom_call.1} parent=107 // pred_check
          %p2904 = pneg %p457
        $region118: #{tpu_custom_call.1} parent=107 // pred_check_branch
          %2906 = sbr.rel (%p2904) target = $region120
        $region119: #{tpu_custom_call.1} parent=107 // pred_region
          %s2907 = smul.u32 4, %s36
          %p2908 = scmp.lt.s32.totalorder %s2907, 7
          %s2909 = scalar_select %p2908, %s2907, 7
          %s2910 = smul.addr %s2909, 8
          %s2911 = scalar_lea.vmem %s18, %s2910
        $region120: #{tpu_custom_call.1} parent=107 // pred_fallthru
          _
      $region108: #{tpu_custom_call.1} parent=5 // pred_fallthru
        _
    $region6: #{tpu_custom_call.1} parent=1 // loop_footer
      %s34 = sadd.s32 1, %s30
    $region7: #{tpu_custom_call.1} parent=1 // loop_footer_branch
      %29 = sbr.rel target = $region3
    $region8: #{tpu_custom_call.1} parent=1 // loop_exit
      _
    %2912 = vsyncpa [#allocation3], 1
    %s2913 = scalar_lea.sflag [#allocation3], 1
    %2914 = vsyncpa %s2913, 1
    %2915 = vsyncpa [#allocation6], 1
    %2916 = vsyncpa [#allocation4], 1
    %s2917 = scalar_lea.sflag [#allocation4], 1
    %2918 = vsyncpa %s2917, 1

</llo_original>
